<compile_context>
chip_gen: v7x
topology: tpu7x:2x2x1
jax: 0.10.0
libtpu: 0.0.40
codegen_flags: <defaults>
</compile_context>

<pallas_src>
import functools

import jax
import jax.numpy as jnp
from jax.experimental import pallas as pl
from jax.experimental.pallas import tpu as pltpu


# ----------------------------------------------------------------------------
# Fused decoder kernel: n LSTM layers + Linear head, everything in vregs
# ----------------------------------------------------------------------------
def _build_decoder_kernel(seq_len, hidden_sizes):
    """Builds a fused kernel for `len(hidden_sizes)` LSTM layers + a final Linear."""
    n_lstm = len(hidden_sizes)
    S = seq_len

    def kernel(*refs):
        # refs = [x, (wih_t, whh_t, bias)*n_lstm, wlin_t, blin_rep, out]
        x_ref = refs[0]
        lstm_refs = [refs[1 + 3 * l: 4 + 3 * l] for l in range(n_lstm)]
        wlin_ref = refs[1 + 3 * n_lstm]
        blin_ref = refs[2 + 3 * n_lstm]
        out_ref = refs[3 + 3 * n_lstm]

        bt = x_ref.shape[0]              # batch tile
        cdt = wlin_ref.dtype             # MXU operand dtype (bf16)

        # Hoist all weight loads out of the (unrolled) time loop.
        wih = [r[0][...] for r in lstm_refs]    # (I_l, 4H_l)
        whh = [r[1][...] for r in lstm_refs]    # (H_l, 4H_l)
        bias = [r[2][...] for r in lstm_refs]   # (1, 4H_l) == b_ih + b_hh (folded once)
        wlin = wlin_ref[...]                    # (H_last, O)

        def cell(gates, c_prev, H):
            # 2 EUP passes (sigmoid + tanh) over the whole (bt, 4H) gate slab instead of
            # 4 quarter-width passes; the lane slices afterwards ride on the XLU slot.
            sg = jax.nn.sigmoid(gates)
            tg = jnp.tanh(gates)
            i_g = sg[:, 0 * H:1 * H]
            f_g = sg[:, 1 * H:2 * H]
            g_g = tg[:, 2 * H:3 * H]
            o_g = sg[:, 3 * H:4 * H]
            c_new = f_g * c_prev + i_g * g_g
            h_new = o_g * jnp.tanh(c_new)
            return h_new, c_new

        # Layer 0's input is the SAME latent at every timestep -> project it exactly once.
        gates_in0 = jnp.dot(x_ref[...].astype(cdt), wih[0],
                            preferred_element_type=jnp.float32) + bias[0]

        h = [jnp.zeros((bt, H), jnp.float32) for H in hidden_sizes]
        c = [jnp.zeros((bt, H), jnp.float32) for H in hidden_sizes]
        ys = []

        # Trace-time unrolled wavefront over time and layers: everything stays in vregs.
        # TODO(synk): for large seq_len switch to lax.fori_loop(..., unroll=4..8) to bound
        # code size (and size any buffers against v7x's 64 MiB VMEM); at S=8 the full
        # unroll hands the scheduler the complete dependency DAG.
        for t in range(S):
            for l in range(n_lstm):
                H = hidden_sizes[l]
                if l == 0:
                    gates = gates_in0
                else:
                    gates = jnp.dot(h[l - 1].astype(cdt), wih[l],
                                    preferred_element_type=jnp.float32) + bias[l]
                if t > 0:  # h_prev == 0 at t == 0, so the hidden projection vanishes
                    gates = gates + jnp.dot(h[l].astype(cdt), whh[l],
                                            preferred_element_type=jnp.float32)
                h[l], c[l] = cell(gates, c[l], H)
            # Per-step linear head: depends only on h[-1] at this step, overlaps the
            # recurrence of later timesteps on the otherwise-idle MXU.
            ys.append(jnp.dot(h[-1].astype(cdt), wlin,
                              preferred_element_type=jnp.float32))

        # Single lane-dense (bt, S*O) store; the linear bias is pre-tiled to (1, S*O)
        # so it is added exactly once.
        out_ref[...] = jnp.concatenate(ys, axis=-1) + blin_ref[...]

    return kernel


# ----------------------------------------------------------------------------
# One-time parameter preparation (keep OUT of the jitted forward)
# ----------------------------------------------------------------------------
def prepare_params(params, seq_len, compute_dtype=jnp.bfloat16):
    """Transposes, bias folding, bf16 casts, bias tiling — done once, not per call."""
    prepped = {"lstm": [], "linear": None}
    for (w_ih, w_hh, b_ih, b_hh) in params["lstm"]:
        H = w_hh.shape[1]
        prepped["lstm"].append((
            jnp.asarray(jnp.transpose(w_ih), compute_dtype),            # (I, 4H)
            jnp.asarray(jnp.transpose(w_hh), compute_dtype),            # (H, 4H)
            (b_ih + b_hh).reshape(1, 4 * H).astype(jnp.float32),        # folded bias
        ))
    w_lin, b_lin = params["linear"]
    O = int(w_lin.shape[0])
    prepped["linear"] = (
        jnp.asarray(jnp.transpose(w_lin), compute_dtype),               # (H, O)
        jnp.tile(b_lin.reshape(1, O), (1, seq_len)).astype(jnp.float32),  # (1, S*O)
    )
    return prepped


# ----------------------------------------------------------------------------
# Decoder forward (matches the PyTorch module semantics)
# ----------------------------------------------------------------------------
def decoder_forward(x, prepped, seq_len):
    """x: (B, 1, F0) batch-first, like the PyTorch module. Returns (B, seq_len, O)."""
    B = x.shape[0]
    F0 = x.shape[-1]
    x2d = x.reshape(B, F0)   # x.repeat(1, S, 1) is folded into the kernel; never materialized

    hidden_sizes = [int(whh_t.shape[0]) for (_, whh_t, _) in prepped["lstm"]]
    w_lin_t, b_lin_rep = prepped["linear"]
    O = int(w_lin_t.shape[1])
    S = seq_len

    # Batch tiling: one tile for small batches; for large divisible batches split into
    # 128-row tiles so the "parallel" grid axis shards across both v7x TensorCores
    # (no-op on v5e/v6e). Larger effective batch also fills the 8-sublane MXU padding.
    bt = B if (B <= 128 or B % 128 != 0) else 128
    nb = B // bt

    flat_inputs = [x2d]
    in_specs = [pl.BlockSpec((bt, F0), lambda i: (i, 0))]
    for (wih_t, whh_t, b) in prepped["lstm"]:
        flat_inputs += [wih_t, whh_t, b]
        in_specs += [pl.BlockSpec(wih_t.shape, lambda i: (0, 0)),
                     pl.BlockSpec(whh_t.shape, lambda i: (0, 0)),
                     pl.BlockSpec(b.shape, lambda i: (0, 0))]
    flat_inputs += [w_lin_t, b_lin_rep]
    in_specs += [pl.BlockSpec(w_lin_t.shape, lambda i: (0, 0)),
                 pl.BlockSpec(b_lin_rep.shape, lambda i: (0, 0))]

    kernel = _build_decoder_kernel(S, hidden_sizes)
    y2d = pl.pallas_call(
        kernel,
        out_shape=jax.ShapeDtypeStruct((B, S * O), jnp.float32),
        grid=(nb,),
        in_specs=in_specs,
        out_specs=pl.BlockSpec((bt, S * O), lambda i: (i, 0)),
        compiler_params=pltpu.CompilerParams(dimension_semantics=("parallel",)),
    )(*flat_inputs)

    # (B, S*O) row-major == (B, S, O) row-major: free reshape, no transpose kernel.
    return y2d.reshape(B, S, O)


# ----------------------------------------------------------------------------
# Pure-JAX reference (for correctness check)
# ----------------------------------------------------------------------------
def _lstm_ref(x_bf, w_ih, w_hh, b_ih, b_hh):
    B, S, I = x_bf.shape
    H = w_hh.shape[1]

    def step(carry, x_t):
        h, c = carry
        gates = x_t @ w_ih.T + b_ih + h @ w_hh.T + b_hh
        i, f, g, o = jnp.split(gates, 4, axis=-1)
        i, f, g, o = jax.nn.sigmoid(i), jax.nn.sigmoid(f), jnp.tanh(g), jax.nn.sigmoid(o)
        c = f * c + i * g
        h = o * jnp.tanh(c)
        return (h, c), h

    init = (jnp.zeros((B, H), jnp.float32), jnp.zeros((B, H), jnp.float32))
    _, ys = jax.lax.scan(step, init, jnp.swapaxes(x_bf, 0, 1))
    return jnp.swapaxes(ys, 0, 1)


def decoder_ref(x, params, seq_len):
    x = jnp.tile(x, (1, seq_len, 1))
    for (w_ih, w_hh, b_ih, b_hh) in params["lstm"]:
        x = _lstm_ref(x, w_ih, w_hh, b_ih, b_hh)
    w_lin, b_lin = params["linear"]
    return x @ w_lin.T + b_lin


# ----------------------------------------------------------------------------
# Deterministic parameter init (PyTorch-style U(-1/sqrt(H), 1/sqrt(H)))
# ----------------------------------------------------------------------------
def init_params(key, num_layers, num_neurons):
    params = {"lstm": [], "linear": None}
    for layer_n in range(num_layers):
        in_size = num_neurons[0] if layer_n == 0 else num_neurons[layer_n - 1]
        hid = num_neurons[layer_n]
        bound = 1.0 / jnp.sqrt(hid)
        key, k1, k2, k3, k4 = jax.random.split(key, 5)
        w_ih = jax.random.uniform(k1, (4 * hid, in_size), jnp.float32, -bound, bound)
        w_hh = jax.random.uniform(k2, (4 * hid, hid), jnp.float32, -bound, bound)
        b_ih = jax.random.uniform(k3, (4 * hid,), jnp.float32, -bound, bound)
        b_hh = jax.random.uniform(k4, (4 * hid,), jnp.float32, -bound, bound)
        params["lstm"].append((w_ih, w_hh, b_ih, b_hh))
    in_size = num_neurons[num_layers - 1]
    out_size = num_neurons[num_layers]
    bound = 1.0 / jnp.sqrt(in_size)
    key, k1, k2 = jax.random.split(key, 3)
    w_lin = jax.random.uniform(k1, (out_size, in_size), jnp.float32, -bound, bound)
    b_lin = jax.random.uniform(k2, (out_size,), jnp.float32, -bound, bound)
    params["linear"] = (w_lin, b_lin)
    return params


if __name__ == "__main__":
    # Small config consistent with the module: seq_len=8, num_layers=2, num_neurons=[32,32,16]
    seq_len = 8
    num_layers = 2
    num_neurons = [32, 32, 16]
    batch = 2

    key = jax.random.PRNGKey(0)
    key, pkey, xkey = jax.random.split(key, 3)
    params = init_params(pkey, num_layers, num_neurons)

    # One-time weight prep (transpose / bias-fold / bf16 cast) stays OUT of the jitted fwd.
    prepped = prepare_params(params, seq_len, compute_dtype=jnp.bfloat16)

    # Encoder latent: (B, 1, num_neurons[0]) — logically repeated to (B, seq_len, num_neurons[0])
    x = jax.random.normal(xkey, (batch, 1, num_neurons[0]), jnp.float32)

    fwd = jax.jit(functools.partial(decoder_forward, seq_len=seq_len))
    y = fwd(x, prepped)
    jax.block_until_ready(y)

    y_ref = decoder_ref(x, params, seq_len)
    assert y.shape == (batch, seq_len, num_neurons[num_layers])
    # bf16 MXU operands (with f32 accumulation) -> relaxed tolerance vs the f32 reference.
    assert jnp.allclose(y, y_ref, atol=5e-2, rtol=5e-2), "mismatch vs pure-JAX reference"

    print("KERNEL_OK")
</pallas_src>

<mosaic_0001>
module attributes {stable_mosaic.version = 11 : i64} {
  func.func @kernel(%arg0: i32, %arg1: memref<2x32xf32, #tpu.memory_space<vmem>>, %arg2: memref<32x128xbf16, #tpu.memory_space<vmem>>, %arg3: memref<32x128xbf16, #tpu.memory_space<vmem>>, %arg4: memref<1x128xf32, #tpu.memory_space<vmem>>, %arg5: memref<32x128xbf16, #tpu.memory_space<vmem>>, %arg6: memref<32x128xbf16, #tpu.memory_space<vmem>>, %arg7: memref<1x128xf32, #tpu.memory_space<vmem>>, %arg8: memref<32x16xbf16, #tpu.memory_space<vmem>>, %arg9: memref<1x128xf32, #tpu.memory_space<vmem>>, %arg10: memref<2x128xf32, #tpu.memory_space<vmem>>) attributes {dimension_semantics = [#tpu.dimension_semantics<parallel>], iteration_bounds = array<i64: 1>, scalar_prefetch = 0 : i64, scratch_operands = 0 : i64, tpu.core_type = #tpu.core_type<tc>, window_params = [{transform_indices = @transform_0, window_bounds = array<i64: 2, 32>}, {pipeline_mode = #tpu.pipeline_mode<synchronous>, transform_indices = @transform_1, window_bounds = array<i64: 32, 128>}, {pipeline_mode = #tpu.pipeline_mode<synchronous>, transform_indices = @transform_2, window_bounds = array<i64: 32, 128>}, {pipeline_mode = #tpu.pipeline_mode<synchronous>, transform_indices = @transform_3, window_bounds = array<i64: 1, 128>}, {pipeline_mode = #tpu.pipeline_mode<synchronous>, transform_indices = @transform_4, window_bounds = array<i64: 32, 128>}, {pipeline_mode = #tpu.pipeline_mode<synchronous>, transform_indices = @transform_5, window_bounds = array<i64: 32, 128>}, {pipeline_mode = #tpu.pipeline_mode<synchronous>, transform_indices = @transform_6, window_bounds = array<i64: 1, 128>}, {pipeline_mode = #tpu.pipeline_mode<synchronous>, transform_indices = @transform_7, window_bounds = array<i64: 32, 16>}, {pipeline_mode = #tpu.pipeline_mode<synchronous>, transform_indices = @transform_8, window_bounds = array<i64: 1, 128>}, {transform_indices = @transform_9, window_bounds = array<i64: 2, 128>}]} {
    %c0 = arith.constant 0 : index
    %c0_0 = arith.constant 0 : index
    %0 = vector.load %arg2[%c0, %c0_0] : memref<32x128xbf16, #tpu.memory_space<vmem>>, vector<32x128xbf16>
    %c0_1 = arith.constant 0 : index
    %c0_2 = arith.constant 0 : index
    %1 = vector.load %arg5[%c0_1, %c0_2] : memref<32x128xbf16, #tpu.memory_space<vmem>>, vector<32x128xbf16>
    %c0_3 = arith.constant 0 : index
    %c0_4 = arith.constant 0 : index
    %2 = vector.load %arg3[%c0_3, %c0_4] : memref<32x128xbf16, #tpu.memory_space<vmem>>, vector<32x128xbf16>
    %c0_5 = arith.constant 0 : index
    %c0_6 = arith.constant 0 : index
    %3 = vector.load %arg6[%c0_5, %c0_6] : memref<32x128xbf16, #tpu.memory_space<vmem>>, vector<32x128xbf16>
    %c0_7 = arith.constant 0 : index
    %c0_8 = arith.constant 0 : index
    %4 = vector.load %arg4[%c0_7, %c0_8] : memref<1x128xf32, #tpu.memory_space<vmem>>, vector<1x128xf32>
    %c0_9 = arith.constant 0 : index
    %c0_10 = arith.constant 0 : index
    %5 = vector.load %arg7[%c0_9, %c0_10] : memref<1x128xf32, #tpu.memory_space<vmem>>, vector<1x128xf32>
    %c0_11 = arith.constant 0 : index
    %c0_12 = arith.constant 0 : index
    %6 = vector.load %arg8[%c0_11, %c0_12] : memref<32x16xbf16, #tpu.memory_space<vmem>>, vector<32x16xbf16>
    %c0_13 = arith.constant 0 : index
    %c0_14 = arith.constant 0 : index
    %7 = vector.load %arg1[%c0_13, %c0_14] : memref<2x32xf32, #tpu.memory_space<vmem>>, vector<2x32xf32>
    %8 = arith.truncf %7 : vector<2x32xf32> to vector<2x32xbf16>
    %cst = arith.constant dense<0.000000e+00> : vector<2x128xf32>
    %9 = tpu.matmul %8, %0, %cst {dimension_numbers = #tpu.dot_dimension_numbers<[1], [0], [0], [1], [0, 0, 1, 1], [], []>} : vector<2x32xbf16>, vector<32x128xbf16>, vector<2x128xf32> -> vector<2x128xf32>
    %10 = vector.broadcast %4 : vector<1x128xf32> to vector<2x128xf32>
    %11 = arith.addf %9, %10 : vector<2x128xf32>
    %cst_15 = arith.constant 0.000000e+00 : f32
    %12 = vector.broadcast %cst_15 : f32 to vector<2x32xf32>
    %cst_16 = arith.constant 0.000000e+00 : f32
    %13 = vector.broadcast %cst_16 : f32 to vector<2x32xf32>
    %14 = arith.negf %11 : vector<2x128xf32>
    %15 = math.exp %14 : vector<2x128xf32>
    %cst_17 = arith.constant 1.000000e+00 : f32
    %16 = vector.broadcast %cst_17 : f32 to vector<2x128xf32>
    %17 = arith.addf %16, %15 : vector<2x128xf32>
    %18 = arith.divf %16, %17 : vector<2x128xf32>
    %19 = math.tanh %11 : vector<2x128xf32>
    %20 = vector.extract_strided_slice %18 {offsets = [0, 0], sizes = [2, 32], strides = [1, 1]} : vector<2x128xf32> to vector<2x32xf32>
    %21 = vector.extract_strided_slice %18 {offsets = [0, 32], sizes = [2, 32], strides = [1, 1]} : vector<2x128xf32> to vector<2x32xf32>
    %22 = vector.extract_strided_slice %19 {offsets = [0, 64], sizes = [2, 32], strides = [1, 1]} : vector<2x128xf32> to vector<2x32xf32>
    %23 = vector.extract_strided_slice %18 {offsets = [0, 96], sizes = [2, 32], strides = [1, 1]} : vector<2x128xf32> to vector<2x32xf32>
    %24 = arith.mulf %21, %12 : vector<2x32xf32>
    %25 = arith.mulf %20, %22 : vector<2x32xf32>
    %26 = arith.addf %24, %25 : vector<2x32xf32>
    %27 = math.tanh %26 : vector<2x32xf32>
    %28 = arith.mulf %23, %27 : vector<2x32xf32>
    %29 = arith.truncf %28 : vector<2x32xf32> to vector<2x32xbf16>
    %cst_18 = arith.constant dense<0.000000e+00> : vector<2x128xf32>
    %30 = tpu.matmul %29, %1, %cst_18 {dimension_numbers = #tpu.dot_dimension_numbers<[1], [0], [0], [1], [0, 0, 1, 1], [], []>} : vector<2x32xbf16>, vector<32x128xbf16>, vector<2x128xf32> -> vector<2x128xf32>
    %31 = vector.broadcast %5 : vector<1x128xf32> to vector<2x128xf32>
    %32 = arith.addf %30, %31 : vector<2x128xf32>
    %33 = arith.negf %32 : vector<2x128xf32>
    %34 = math.exp %33 : vector<2x128xf32>
    %cst_19 = arith.constant 1.000000e+00 : f32
    %35 = vector.broadcast %cst_19 : f32 to vector<2x128xf32>
    %36 = arith.addf %35, %34 : vector<2x128xf32>
    %37 = arith.divf %35, %36 : vector<2x128xf32>
    %38 = math.tanh %32 : vector<2x128xf32>
    %39 = vector.extract_strided_slice %37 {offsets = [0, 0], sizes = [2, 32], strides = [1, 1]} : vector<2x128xf32> to vector<2x32xf32>
    %40 = vector.extract_strided_slice %37 {offsets = [0, 32], sizes = [2, 32], strides = [1, 1]} : vector<2x128xf32> to vector<2x32xf32>
    %41 = vector.extract_strided_slice %38 {offsets = [0, 64], sizes = [2, 32], strides = [1, 1]} : vector<2x128xf32> to vector<2x32xf32>
    %42 = vector.extract_strided_slice %37 {offsets = [0, 96], sizes = [2, 32], strides = [1, 1]} : vector<2x128xf32> to vector<2x32xf32>
    %43 = arith.mulf %40, %13 : vector<2x32xf32>
    %44 = arith.mulf %39, %41 : vector<2x32xf32>
    %45 = arith.addf %43, %44 : vector<2x32xf32>
    %46 = math.tanh %45 : vector<2x32xf32>
    %47 = arith.mulf %42, %46 : vector<2x32xf32>
    %48 = arith.truncf %47 : vector<2x32xf32> to vector<2x32xbf16>
    %cst_20 = arith.constant dense<0.000000e+00> : vector<2x16xf32>
    %49 = tpu.matmul %48, %6, %cst_20 {dimension_numbers = #tpu.dot_dimension_numbers<[1], [0], [0], [1], [0, 0, 1, 1], [], []>} : vector<2x32xbf16>, vector<32x16xbf16>, vector<2x16xf32> -> vector<2x16xf32>
    %50 = arith.truncf %28 : vector<2x32xf32> to vector<2x32xbf16>
    %cst_21 = arith.constant dense<0.000000e+00> : vector<2x128xf32>
    %51 = tpu.matmul %50, %2, %cst_21 {dimension_numbers = #tpu.dot_dimension_numbers<[1], [0], [0], [1], [0, 0, 1, 1], [], []>} : vector<2x32xbf16>, vector<32x128xbf16>, vector<2x128xf32> -> vector<2x128xf32>
    %52 = arith.addf %11, %51 : vector<2x128xf32>
    %53 = arith.negf %52 : vector<2x128xf32>
    %54 = math.exp %53 : vector<2x128xf32>
    %cst_22 = arith.constant 1.000000e+00 : f32
    %55 = vector.broadcast %cst_22 : f32 to vector<2x128xf32>
    %56 = arith.addf %55, %54 : vector<2x128xf32>
    %57 = arith.divf %55, %56 : vector<2x128xf32>
    %58 = math.tanh %52 : vector<2x128xf32>
    %59 = vector.extract_strided_slice %57 {offsets = [0, 0], sizes = [2, 32], strides = [1, 1]} : vector<2x128xf32> to vector<2x32xf32>
    %60 = vector.extract_strided_slice %57 {offsets = [0, 32], sizes = [2, 32], strides = [1, 1]} : vector<2x128xf32> to vector<2x32xf32>
    %61 = vector.extract_strided_slice %58 {offsets = [0, 64], sizes = [2, 32], strides = [1, 1]} : vector<2x128xf32> to vector<2x32xf32>
    %62 = vector.extract_strided_slice %57 {offsets = [0, 96], sizes = [2, 32], strides = [1, 1]} : vector<2x128xf32> to vector<2x32xf32>
    %63 = arith.mulf %60, %26 : vector<2x32xf32>
    %64 = arith.mulf %59, %61 : vector<2x32xf32>
    %65 = arith.addf %63, %64 : vector<2x32xf32>
    %66 = math.tanh %65 : vector<2x32xf32>
    %67 = arith.mulf %62, %66 : vector<2x32xf32>
    %68 = arith.truncf %67 : vector<2x32xf32> to vector<2x32xbf16>
    %cst_23 = arith.constant dense<0.000000e+00> : vector<2x128xf32>
    %69 = tpu.matmul %68, %1, %cst_23 {dimension_numbers = #tpu.dot_dimension_numbers<[1], [0], [0], [1], [0, 0, 1, 1], [], []>} : vector<2x32xbf16>, vector<32x128xbf16>, vector<2x128xf32> -> vector<2x128xf32>
    %70 = vector.broadcast %5 : vector<1x128xf32> to vector<2x128xf32>
    %71 = arith.addf %69, %70 : vector<2x128xf32>
    %72 = arith.truncf %47 : vector<2x32xf32> to vector<2x32xbf16>
    %cst_24 = arith.constant dense<0.000000e+00> : vector<2x128xf32>
    %73 = tpu.matmul %72, %3, %cst_24 {dimension_numbers = #tpu.dot_dimension_numbers<[1], [0], [0], [1], [0, 0, 1, 1], [], []>} : vector<2x32xbf16>, vector<32x128xbf16>, vector<2x128xf32> -> vector<2x128xf32>
    %74 = arith.addf %71, %73 : vector<2x128xf32>
    %75 = arith.negf %74 : vector<2x128xf32>
    %76 = math.exp %75 : vector<2x128xf32>
    %cst_25 = arith.constant 1.000000e+00 : f32
    %77 = vector.broadcast %cst_25 : f32 to vector<2x128xf32>
    %78 = arith.addf %77, %76 : vector<2x128xf32>
    %79 = arith.divf %77, %78 : vector<2x128xf32>
    %80 = math.tanh %74 : vector<2x128xf32>
    %81 = vector.extract_strided_slice %79 {offsets = [0, 0], sizes = [2, 32], strides = [1, 1]} : vector<2x128xf32> to vector<2x32xf32>
    %82 = vector.extract_strided_slice %79 {offsets = [0, 32], sizes = [2, 32], strides = [1, 1]} : vector<2x128xf32> to vector<2x32xf32>
    %83 = vector.extract_strided_slice %80 {offsets = [0, 64], sizes = [2, 32], strides = [1, 1]} : vector<2x128xf32> to vector<2x32xf32>
    %84 = vector.extract_strided_slice %79 {offsets = [0, 96], sizes = [2, 32], strides = [1, 1]} : vector<2x128xf32> to vector<2x32xf32>
    %85 = arith.mulf %82, %45 : vector<2x32xf32>
    %86 = arith.mulf %81, %83 : vector<2x32xf32>
    %87 = arith.addf %85, %86 : vector<2x32xf32>
    %88 = math.tanh %87 : vector<2x32xf32>
    %89 = arith.mulf %84, %88 : vector<2x32xf32>
    %90 = arith.truncf %89 : vector<2x32xf32> to vector<2x32xbf16>
    %cst_26 = arith.constant dense<0.000000e+00> : vector<2x16xf32>
    %91 = tpu.matmul %90, %6, %cst_26 {dimension_numbers = #tpu.dot_dimension_numbers<[1], [0], [0], [1], [0, 0, 1, 1], [], []>} : vector<2x32xbf16>, vector<32x16xbf16>, vector<2x16xf32> -> vector<2x16xf32>
    %92 = arith.truncf %67 : vector<2x32xf32> to vector<2x32xbf16>
    %cst_27 = arith.constant dense<0.000000e+00> : vector<2x128xf32>
    %93 = tpu.matmul %92, %2, %cst_27 {dimension_numbers = #tpu.dot_dimension_numbers<[1], [0], [0], [1], [0, 0, 1, 1], [], []>} : vector<2x32xbf16>, vector<32x128xbf16>, vector<2x128xf32> -> vector<2x128xf32>
    %94 = arith.addf %11, %93 : vector<2x128xf32>
    %95 = arith.negf %94 : vector<2x128xf32>
    %96 = math.exp %95 : vector<2x128xf32>
    %cst_28 = arith.constant 1.000000e+00 : f32
    %97 = vector.broadcast %cst_28 : f32 to vector<2x128xf32>
    %98 = arith.addf %97, %96 : vector<2x128xf32>
    %99 = arith.divf %97, %98 : vector<2x128xf32>
    %100 = math.tanh %94 : vector<2x128xf32>
    %101 = vector.extract_strided_slice %99 {offsets = [0, 0], sizes = [2, 32], strides = [1, 1]} : vector<2x128xf32> to vector<2x32xf32>
    %102 = vector.extract_strided_slice %99 {offsets = [0, 32], sizes = [2, 32], strides = [1, 1]} : vector<2x128xf32> to vector<2x32xf32>
    %103 = vector.extract_strided_slice %100 {offsets = [0, 64], sizes = [2, 32], strides = [1, 1]} : vector<2x128xf32> to vector<2x32xf32>
    %104 = vector.extract_strided_slice %99 {offsets = [0, 96], sizes = [2, 32], strides = [1, 1]} : vector<2x128xf32> to vector<2x32xf32>
    %105 = arith.mulf %102, %65 : vector<2x32xf32>
    %106 = arith.mulf %101, %103 : vector<2x32xf32>
    %107 = arith.addf %105, %106 : vector<2x32xf32>
    %108 = math.tanh %107 : vector<2x32xf32>
    %109 = arith.mulf %104, %108 : vector<2x32xf32>
    %110 = arith.truncf %109 : vector<2x32xf32> to vector<2x32xbf16>
    %cst_29 = arith.constant dense<0.000000e+00> : vector<2x128xf32>
    %111 = tpu.matmul %110, %1, %cst_29 {dimension_numbers = #tpu.dot_dimension_numbers<[1], [0], [0], [1], [0, 0, 1, 1], [], []>} : vector<2x32xbf16>, vector<32x128xbf16>, vector<2x128xf32> -> vector<2x128xf32>
    %112 = vector.broadcast %5 : vector<1x128xf32> to vector<2x128xf32>
    %113 = arith.addf %111, %112 : vector<2x128xf32>
    %114 = arith.truncf %89 : vector<2x32xf32> to vector<2x32xbf16>
    %cst_30 = arith.constant dense<0.000000e+00> : vector<2x128xf32>
    %115 = tpu.matmul %114, %3, %cst_30 {dimension_numbers = #tpu.dot_dimension_numbers<[1], [0], [0], [1], [0, 0, 1, 1], [], []>} : vector<2x32xbf16>, vector<32x128xbf16>, vector<2x128xf32> -> vector<2x128xf32>
    %116 = arith.addf %113, %115 : vector<2x128xf32>
    %117 = arith.negf %116 : vector<2x128xf32>
    %118 = math.exp %117 : vector<2x128xf32>
    %cst_31 = arith.constant 1.000000e+00 : f32
    %119 = vector.broadcast %cst_31 : f32 to vector<2x128xf32>
    %120 = arith.addf %119, %118 : vector<2x128xf32>
    %121 = arith.divf %119, %120 : vector<2x128xf32>
    %122 = math.tanh %116 : vector<2x128xf32>
    %123 = vector.extract_strided_slice %121 {offsets = [0, 0], sizes = [2, 32], strides = [1, 1]} : vector<2x128xf32> to vector<2x32xf32>
    %124 = vector.extract_strided_slice %121 {offsets = [0, 32], sizes = [2, 32], strides = [1, 1]} : vector<2x128xf32> to vector<2x32xf32>
    %125 = vector.extract_strided_slice %122 {offsets = [0, 64], sizes = [2, 32], strides = [1, 1]} : vector<2x128xf32> to vector<2x32xf32>
    %126 = vector.extract_strided_slice %121 {offsets = [0, 96], sizes = [2, 32], strides = [1, 1]} : vector<2x128xf32> to vector<2x32xf32>
    %127 = arith.mulf %124, %87 : vector<2x32xf32>
    %128 = arith.mulf %123, %125 : vector<2x32xf32>
    %129 = arith.addf %127, %128 : vector<2x32xf32>
    %130 = math.tanh %129 : vector<2x32xf32>
    %131 = arith.mulf %126, %130 : vector<2x32xf32>
    %132 = arith.truncf %131 : vector<2x32xf32> to vector<2x32xbf16>
    %cst_32 = arith.constant dense<0.000000e+00> : vector<2x16xf32>
    %133 = tpu.matmul %132, %6, %cst_32 {dimension_numbers = #tpu.dot_dimension_numbers<[1], [0], [0], [1], [0, 0, 1, 1], [], []>} : vector<2x32xbf16>, vector<32x16xbf16>, vector<2x16xf32> -> vector<2x16xf32>
    %134 = arith.truncf %109 : vector<2x32xf32> to vector<2x32xbf16>
    %cst_33 = arith.constant dense<0.000000e+00> : vector<2x128xf32>
    %135 = tpu.matmul %134, %2, %cst_33 {dimension_numbers = #tpu.dot_dimension_numbers<[1], [0], [0], [1], [0, 0, 1, 1], [], []>} : vector<2x32xbf16>, vector<32x128xbf16>, vector<2x128xf32> -> vector<2x128xf32>
    %136 = arith.addf %11, %135 : vector<2x128xf32>
    %137 = arith.negf %136 : vector<2x128xf32>
    %138 = math.exp %137 : vector<2x128xf32>
    %cst_34 = arith.constant 1.000000e+00 : f32
    %139 = vector.broadcast %cst_34 : f32 to vector<2x128xf32>
    %140 = arith.addf %139, %138 : vector<2x128xf32>
    %141 = arith.divf %139, %140 : vector<2x128xf32>
    %142 = math.tanh %136 : vector<2x128xf32>
    %143 = vector.extract_strided_slice %141 {offsets = [0, 0], sizes = [2, 32], strides = [1, 1]} : vector<2x128xf32> to vector<2x32xf32>
    %144 = vector.extract_strided_slice %141 {offsets = [0, 32], sizes = [2, 32], strides = [1, 1]} : vector<2x128xf32> to vector<2x32xf32>
    %145 = vector.extract_strided_slice %142 {offsets = [0, 64], sizes = [2, 32], strides = [1, 1]} : vector<2x128xf32> to vector<2x32xf32>
    %146 = vector.extract_strided_slice %141 {offsets = [0, 96], sizes = [2, 32], strides = [1, 1]} : vector<2x128xf32> to vector<2x32xf32>
    %147 = arith.mulf %144, %107 : vector<2x32xf32>
    %148 = arith.mulf %143, %145 : vector<2x32xf32>
    %149 = arith.addf %147, %148 : vector<2x32xf32>
    %150 = math.tanh %149 : vector<2x32xf32>
    %151 = arith.mulf %146, %150 : vector<2x32xf32>
    %152 = arith.truncf %151 : vector<2x32xf32> to vector<2x32xbf16>
    %cst_35 = arith.constant dense<0.000000e+00> : vector<2x128xf32>
    %153 = tpu.matmul %152, %1, %cst_35 {dimension_numbers = #tpu.dot_dimension_numbers<[1], [0], [0], [1], [0, 0, 1, 1], [], []>} : vector<2x32xbf16>, vector<32x128xbf16>, vector<2x128xf32> -> vector<2x128xf32>
    %154 = vector.broadcast %5 : vector<1x128xf32> to vector<2x128xf32>
    %155 = arith.addf %153, %154 : vector<2x128xf32>
    %156 = arith.truncf %131 : vector<2x32xf32> to vector<2x32xbf16>
    %cst_36 = arith.constant dense<0.000000e+00> : vector<2x128xf32>
    %157 = tpu.matmul %156, %3, %cst_36 {dimension_numbers = #tpu.dot_dimension_numbers<[1], [0], [0], [1], [0, 0, 1, 1], [], []>} : vector<2x32xbf16>, vector<32x128xbf16>, vector<2x128xf32> -> vector<2x128xf32>
    %158 = arith.addf %155, %157 : vector<2x128xf32>
    %159 = arith.negf %158 : vector<2x128xf32>
    %160 = math.exp %159 : vector<2x128xf32>
    %cst_37 = arith.constant 1.000000e+00 : f32
    %161 = vector.broadcast %cst_37 : f32 to vector<2x128xf32>
    %162 = arith.addf %161, %160 : vector<2x128xf32>
    %163 = arith.divf %161, %162 : vector<2x128xf32>
    %164 = math.tanh %158 : vector<2x128xf32>
    %165 = vector.extract_strided_slice %163 {offsets = [0, 0], sizes = [2, 32], strides = [1, 1]} : vector<2x128xf32> to vector<2x32xf32>
    %166 = vector.extract_strided_slice %163 {offsets = [0, 32], sizes = [2, 32], strides = [1, 1]} : vector<2x128xf32> to vector<2x32xf32>
    %167 = vector.extract_strided_slice %164 {offsets = [0, 64], sizes = [2, 32], strides = [1, 1]} : vector<2x128xf32> to vector<2x32xf32>
    %168 = vector.extract_strided_slice %163 {offsets = [0, 96], sizes = [2, 32], strides = [1, 1]} : vector<2x128xf32> to vector<2x32xf32>
    %169 = arith.mulf %166, %129 : vector<2x32xf32>
    %170 = arith.mulf %165, %167 : vector<2x32xf32>
    %171 = arith.addf %169, %170 : vector<2x32xf32>
    %172 = math.tanh %171 : vector<2x32xf32>
    %173 = arith.mulf %168, %172 : vector<2x32xf32>
    %174 = arith.truncf %173 : vector<2x32xf32> to vector<2x32xbf16>
    %cst_38 = arith.constant dense<0.000000e+00> : vector<2x16xf32>
    %175 = tpu.matmul %174, %6, %cst_38 {dimension_numbers = #tpu.dot_dimension_numbers<[1], [0], [0], [1], [0, 0, 1, 1], [], []>} : vector<2x32xbf16>, vector<32x16xbf16>, vector<2x16xf32> -> vector<2x16xf32>
    %176 = arith.truncf %151 : vector<2x32xf32> to vector<2x32xbf16>
    %cst_39 = arith.constant dense<0.000000e+00> : vector<2x128xf32>
    %177 = tpu.matmul %176, %2, %cst_39 {dimension_numbers = #tpu.dot_dimension_numbers<[1], [0], [0], [1], [0, 0, 1, 1], [], []>} : vector<2x32xbf16>, vector<32x128xbf16>, vector<2x128xf32> -> vector<2x128xf32>
    %178 = arith.addf %11, %177 : vector<2x128xf32>
    %179 = arith.negf %178 : vector<2x128xf32>
    %180 = math.exp %179 : vector<2x128xf32>
    %cst_40 = arith.constant 1.000000e+00 : f32
    %181 = vector.broadcast %cst_40 : f32 to vector<2x128xf32>
    %182 = arith.addf %181, %180 : vector<2x128xf32>
    %183 = arith.divf %181, %182 : vector<2x128xf32>
    %184 = math.tanh %178 : vector<2x128xf32>
    %185 = vector.extract_strided_slice %183 {offsets = [0, 0], sizes = [2, 32], strides = [1, 1]} : vector<2x128xf32> to vector<2x32xf32>
    %186 = vector.extract_strided_slice %183 {offsets = [0, 32], sizes = [2, 32], strides = [1, 1]} : vector<2x128xf32> to vector<2x32xf32>
    %187 = vector.extract_strided_slice %184 {offsets = [0, 64], sizes = [2, 32], strides = [1, 1]} : vector<2x128xf32> to vector<2x32xf32>
    %188 = vector.extract_strided_slice %183 {offsets = [0, 96], sizes = [2, 32], strides = [1, 1]} : vector<2x128xf32> to vector<2x32xf32>
    %189 = arith.mulf %186, %149 : vector<2x32xf32>
    %190 = arith.mulf %185, %187 : vector<2x32xf32>
    %191 = arith.addf %189, %190 : vector<2x32xf32>
    %192 = math.tanh %191 : vector<2x32xf32>
    %193 = arith.mulf %188, %192 : vector<2x32xf32>
    %194 = arith.truncf %193 : vector<2x32xf32> to vector<2x32xbf16>
    %cst_41 = arith.constant dense<0.000000e+00> : vector<2x128xf32>
    %195 = tpu.matmul %194, %1, %cst_41 {dimension_numbers = #tpu.dot_dimension_numbers<[1], [0], [0], [1], [0, 0, 1, 1], [], []>} : vector<2x32xbf16>, vector<32x128xbf16>, vector<2x128xf32> -> vector<2x128xf32>
    %196 = vector.broadcast %5 : vector<1x128xf32> to vector<2x128xf32>
    %197 = arith.addf %195, %196 : vector<2x128xf32>
    %198 = arith.truncf %173 : vector<2x32xf32> to vector<2x32xbf16>
    %cst_42 = arith.constant dense<0.000000e+00> : vector<2x128xf32>
    %199 = tpu.matmul %198, %3, %cst_42 {dimension_numbers = #tpu.dot_dimension_numbers<[1], [0], [0], [1], [0, 0, 1, 1], [], []>} : vector<2x32xbf16>, vector<32x128xbf16>, vector<2x128xf32> -> vector<2x128xf32>
    %200 = arith.addf %197, %199 : vector<2x128xf32>
    %201 = arith.negf %200 : vector<2x128xf32>
    %202 = math.exp %201 : vector<2x128xf32>
    %cst_43 = arith.constant 1.000000e+00 : f32
    %203 = vector.broadcast %cst_43 : f32 to vector<2x128xf32>
    %204 = arith.addf %203, %202 : vector<2x128xf32>
    %205 = arith.divf %203, %204 : vector<2x128xf32>
    %206 = math.tanh %200 : vector<2x128xf32>
    %207 = vector.extract_strided_slice %205 {offsets = [0, 0], sizes = [2, 32], strides = [1, 1]} : vector<2x128xf32> to vector<2x32xf32>
    %208 = vector.extract_strided_slice %205 {offsets = [0, 32], sizes = [2, 32], strides = [1, 1]} : vector<2x128xf32> to vector<2x32xf32>
    %209 = vector.extract_strided_slice %206 {offsets = [0, 64], sizes = [2, 32], strides = [1, 1]} : vector<2x128xf32> to vector<2x32xf32>
    %210 = vector.extract_strided_slice %205 {offsets = [0, 96], sizes = [2, 32], strides = [1, 1]} : vector<2x128xf32> to vector<2x32xf32>
    %211 = arith.mulf %208, %171 : vector<2x32xf32>
    %212 = arith.mulf %207, %209 : vector<2x32xf32>
    %213 = arith.addf %211, %212 : vector<2x32xf32>
    %214 = math.tanh %213 : vector<2x32xf32>
    %215 = arith.mulf %210, %214 : vector<2x32xf32>
    %216 = arith.truncf %215 : vector<2x32xf32> to vector<2x32xbf16>
    %cst_44 = arith.constant dense<0.000000e+00> : vector<2x16xf32>
    %217 = tpu.matmul %216, %6, %cst_44 {dimension_numbers = #tpu.dot_dimension_numbers<[1], [0], [0], [1], [0, 0, 1, 1], [], []>} : vector<2x32xbf16>, vector<32x16xbf16>, vector<2x16xf32> -> vector<2x16xf32>
    %218 = arith.truncf %193 : vector<2x32xf32> to vector<2x32xbf16>
    %cst_45 = arith.constant dense<0.000000e+00> : vector<2x128xf32>
    %219 = tpu.matmul %218, %2, %cst_45 {dimension_numbers = #tpu.dot_dimension_numbers<[1], [0], [0], [1], [0, 0, 1, 1], [], []>} : vector<2x32xbf16>, vector<32x128xbf16>, vector<2x128xf32> -> vector<2x128xf32>
    %220 = arith.addf %11, %219 : vector<2x128xf32>
    %221 = arith.negf %220 : vector<2x128xf32>
    %222 = math.exp %221 : vector<2x128xf32>
    %cst_46 = arith.constant 1.000000e+00 : f32
    %223 = vector.broadcast %cst_46 : f32 to vector<2x128xf32>
    %224 = arith.addf %223, %222 : vector<2x128xf32>
    %225 = arith.divf %223, %224 : vector<2x128xf32>
    %226 = math.tanh %220 : vector<2x128xf32>
    %227 = vector.extract_strided_slice %225 {offsets = [0, 0], sizes = [2, 32], strides = [1, 1]} : vector<2x128xf32> to vector<2x32xf32>
    %228 = vector.extract_strided_slice %225 {offsets = [0, 32], sizes = [2, 32], strides = [1, 1]} : vector<2x128xf32> to vector<2x32xf32>
    %229 = vector.extract_strided_slice %226 {offsets = [0, 64], sizes = [2, 32], strides = [1, 1]} : vector<2x128xf32> to vector<2x32xf32>
    %230 = vector.extract_strided_slice %225 {offsets = [0, 96], sizes = [2, 32], strides = [1, 1]} : vector<2x128xf32> to vector<2x32xf32>
    %231 = arith.mulf %228, %191 : vector<2x32xf32>
    %232 = arith.mulf %227, %229 : vector<2x32xf32>
    %233 = arith.addf %231, %232 : vector<2x32xf32>
    %234 = math.tanh %233 : vector<2x32xf32>
    %235 = arith.mulf %230, %234 : vector<2x32xf32>
    %236 = arith.truncf %235 : vector<2x32xf32> to vector<2x32xbf16>
    %cst_47 = arith.constant dense<0.000000e+00> : vector<2x128xf32>
    %237 = tpu.matmul %236, %1, %cst_47 {dimension_numbers = #tpu.dot_dimension_numbers<[1], [0], [0], [1], [0, 0, 1, 1], [], []>} : vector<2x32xbf16>, vector<32x128xbf16>, vector<2x128xf32> -> vector<2x128xf32>
    %238 = vector.broadcast %5 : vector<1x128xf32> to vector<2x128xf32>
    %239 = arith.addf %237, %238 : vector<2x128xf32>
    %240 = arith.truncf %215 : vector<2x32xf32> to vector<2x32xbf16>
    %cst_48 = arith.constant dense<0.000000e+00> : vector<2x128xf32>
    %241 = tpu.matmul %240, %3, %cst_48 {dimension_numbers = #tpu.dot_dimension_numbers<[1], [0], [0], [1], [0, 0, 1, 1], [], []>} : vector<2x32xbf16>, vector<32x128xbf16>, vector<2x128xf32> -> vector<2x128xf32>
    %242 = arith.addf %239, %241 : vector<2x128xf32>
    %243 = arith.negf %242 : vector<2x128xf32>
    %244 = math.exp %243 : vector<2x128xf32>
    %cst_49 = arith.constant 1.000000e+00 : f32
    %245 = vector.broadcast %cst_49 : f32 to vector<2x128xf32>
    %246 = arith.addf %245, %244 : vector<2x128xf32>
    %247 = arith.divf %245, %246 : vector<2x128xf32>
    %248 = math.tanh %242 : vector<2x128xf32>
    %249 = vector.extract_strided_slice %247 {offsets = [0, 0], sizes = [2, 32], strides = [1, 1]} : vector<2x128xf32> to vector<2x32xf32>
    %250 = vector.extract_strided_slice %247 {offsets = [0, 32], sizes = [2, 32], strides = [1, 1]} : vector<2x128xf32> to vector<2x32xf32>
    %251 = vector.extract_strided_slice %248 {offsets = [0, 64], sizes = [2, 32], strides = [1, 1]} : vector<2x128xf32> to vector<2x32xf32>
    %252 = vector.extract_strided_slice %247 {offsets = [0, 96], sizes = [2, 32], strides = [1, 1]} : vector<2x128xf32> to vector<2x32xf32>
    %253 = arith.mulf %250, %213 : vector<2x32xf32>
    %254 = arith.mulf %249, %251 : vector<2x32xf32>
    %255 = arith.addf %253, %254 : vector<2x32xf32>
    %256 = math.tanh %255 : vector<2x32xf32>
    %257 = arith.mulf %252, %256 : vector<2x32xf32>
    %258 = arith.truncf %257 : vector<2x32xf32> to vector<2x32xbf16>
    %cst_50 = arith.constant dense<0.000000e+00> : vector<2x16xf32>
    %259 = tpu.matmul %258, %6, %cst_50 {dimension_numbers = #tpu.dot_dimension_numbers<[1], [0], [0], [1], [0, 0, 1, 1], [], []>} : vector<2x32xbf16>, vector<32x16xbf16>, vector<2x16xf32> -> vector<2x16xf32>
    %260 = arith.truncf %235 : vector<2x32xf32> to vector<2x32xbf16>
    %cst_51 = arith.constant dense<0.000000e+00> : vector<2x128xf32>
    %261 = tpu.matmul %260, %2, %cst_51 {dimension_numbers = #tpu.dot_dimension_numbers<[1], [0], [0], [1], [0, 0, 1, 1], [], []>} : vector<2x32xbf16>, vector<32x128xbf16>, vector<2x128xf32> -> vector<2x128xf32>
    %262 = arith.addf %11, %261 : vector<2x128xf32>
    %263 = arith.negf %262 : vector<2x128xf32>
    %264 = math.exp %263 : vector<2x128xf32>
    %cst_52 = arith.constant 1.000000e+00 : f32
    %265 = vector.broadcast %cst_52 : f32 to vector<2x128xf32>
    %266 = arith.addf %265, %264 : vector<2x128xf32>
    %267 = arith.divf %265, %266 : vector<2x128xf32>
    %268 = math.tanh %262 : vector<2x128xf32>
    %269 = vector.extract_strided_slice %267 {offsets = [0, 0], sizes = [2, 32], strides = [1, 1]} : vector<2x128xf32> to vector<2x32xf32>
    %270 = vector.extract_strided_slice %267 {offsets = [0, 32], sizes = [2, 32], strides = [1, 1]} : vector<2x128xf32> to vector<2x32xf32>
    %271 = vector.extract_strided_slice %268 {offsets = [0, 64], sizes = [2, 32], strides = [1, 1]} : vector<2x128xf32> to vector<2x32xf32>
    %272 = vector.extract_strided_slice %267 {offsets = [0, 96], sizes = [2, 32], strides = [1, 1]} : vector<2x128xf32> to vector<2x32xf32>
    %273 = arith.mulf %270, %233 : vector<2x32xf32>
    %274 = arith.mulf %269, %271 : vector<2x32xf32>
    %275 = arith.addf %273, %274 : vector<2x32xf32>
    %276 = math.tanh %275 : vector<2x32xf32>
    %277 = arith.mulf %272, %276 : vector<2x32xf32>
    %278 = arith.truncf %277 : vector<2x32xf32> to vector<2x32xbf16>
    %cst_53 = arith.constant dense<0.000000e+00> : vector<2x128xf32>
    %279 = tpu.matmul %278, %1, %cst_53 {dimension_numbers = #tpu.dot_dimension_numbers<[1], [0], [0], [1], [0, 0, 1, 1], [], []>} : vector<2x32xbf16>, vector<32x128xbf16>, vector<2x128xf32> -> vector<2x128xf32>
    %280 = vector.broadcast %5 : vector<1x128xf32> to vector<2x128xf32>
    %281 = arith.addf %279, %280 : vector<2x128xf32>
    %282 = arith.truncf %257 : vector<2x32xf32> to vector<2x32xbf16>
    %cst_54 = arith.constant dense<0.000000e+00> : vector<2x128xf32>
    %283 = tpu.matmul %282, %3, %cst_54 {dimension_numbers = #tpu.dot_dimension_numbers<[1], [0], [0], [1], [0, 0, 1, 1], [], []>} : vector<2x32xbf16>, vector<32x128xbf16>, vector<2x128xf32> -> vector<2x128xf32>
    %284 = arith.addf %281, %283 : vector<2x128xf32>
    %285 = arith.negf %284 : vector<2x128xf32>
    %286 = math.exp %285 : vector<2x128xf32>
    %cst_55 = arith.constant 1.000000e+00 : f32
    %287 = vector.broadcast %cst_55 : f32 to vector<2x128xf32>
    %288 = arith.addf %287, %286 : vector<2x128xf32>
    %289 = arith.divf %287, %288 : vector<2x128xf32>
    %290 = math.tanh %284 : vector<2x128xf32>
    %291 = vector.extract_strided_slice %289 {offsets = [0, 0], sizes = [2, 32], strides = [1, 1]} : vector<2x128xf32> to vector<2x32xf32>
    %292 = vector.extract_strided_slice %289 {offsets = [0, 32], sizes = [2, 32], strides = [1, 1]} : vector<2x128xf32> to vector<2x32xf32>
    %293 = vector.extract_strided_slice %290 {offsets = [0, 64], sizes = [2, 32], strides = [1, 1]} : vector<2x128xf32> to vector<2x32xf32>
    %294 = vector.extract_strided_slice %289 {offsets = [0, 96], sizes = [2, 32], strides = [1, 1]} : vector<2x128xf32> to vector<2x32xf32>
    %295 = arith.mulf %292, %255 : vector<2x32xf32>
    %296 = arith.mulf %291, %293 : vector<2x32xf32>
    %297 = arith.addf %295, %296 : vector<2x32xf32>
    %298 = math.tanh %297 : vector<2x32xf32>
    %299 = arith.mulf %294, %298 : vector<2x32xf32>
    %300 = arith.truncf %299 : vector<2x32xf32> to vector<2x32xbf16>
    %cst_56 = arith.constant dense<0.000000e+00> : vector<2x16xf32>
    %301 = tpu.matmul %300, %6, %cst_56 {dimension_numbers = #tpu.dot_dimension_numbers<[1], [0], [0], [1], [0, 0, 1, 1], [], []>} : vector<2x32xbf16>, vector<32x16xbf16>, vector<2x16xf32> -> vector<2x16xf32>
    %302 = arith.truncf %277 : vector<2x32xf32> to vector<2x32xbf16>
    %cst_57 = arith.constant dense<0.000000e+00> : vector<2x128xf32>
    %303 = tpu.matmul %302, %2, %cst_57 {dimension_numbers = #tpu.dot_dimension_numbers<[1], [0], [0], [1], [0, 0, 1, 1], [], []>} : vector<2x32xbf16>, vector<32x128xbf16>, vector<2x128xf32> -> vector<2x128xf32>
    %304 = arith.addf %11, %303 : vector<2x128xf32>
    %305 = arith.negf %304 : vector<2x128xf32>
    %306 = math.exp %305 : vector<2x128xf32>
    %cst_58 = arith.constant 1.000000e+00 : f32
    %307 = vector.broadcast %cst_58 : f32 to vector<2x128xf32>
    %308 = arith.addf %307, %306 : vector<2x128xf32>
    %309 = arith.divf %307, %308 : vector<2x128xf32>
    %310 = math.tanh %304 : vector<2x128xf32>
    %311 = vector.extract_strided_slice %309 {offsets = [0, 0], sizes = [2, 32], strides = [1, 1]} : vector<2x128xf32> to vector<2x32xf32>
    %312 = vector.extract_strided_slice %309 {offsets = [0, 32], sizes = [2, 32], strides = [1, 1]} : vector<2x128xf32> to vector<2x32xf32>
    %313 = vector.extract_strided_slice %310 {offsets = [0, 64], sizes = [2, 32], strides = [1, 1]} : vector<2x128xf32> to vector<2x32xf32>
    %314 = vector.extract_strided_slice %309 {offsets = [0, 96], sizes = [2, 32], strides = [1, 1]} : vector<2x128xf32> to vector<2x32xf32>
    %315 = arith.mulf %312, %275 : vector<2x32xf32>
    %316 = arith.mulf %311, %313 : vector<2x32xf32>
    %317 = arith.addf %315, %316 : vector<2x32xf32>
    %318 = math.tanh %317 : vector<2x32xf32>
    %319 = arith.mulf %314, %318 : vector<2x32xf32>
    %320 = arith.truncf %319 : vector<2x32xf32> to vector<2x32xbf16>
    %cst_59 = arith.constant dense<0.000000e+00> : vector<2x128xf32>
    %321 = tpu.matmul %320, %1, %cst_59 {dimension_numbers = #tpu.dot_dimension_numbers<[1], [0], [0], [1], [0, 0, 1, 1], [], []>} : vector<2x32xbf16>, vector<32x128xbf16>, vector<2x128xf32> -> vector<2x128xf32>
    %322 = vector.broadcast %5 : vector<1x128xf32> to vector<2x128xf32>
    %323 = arith.addf %321, %322 : vector<2x128xf32>
    %324 = arith.truncf %299 : vector<2x32xf32> to vector<2x32xbf16>
    %cst_60 = arith.constant dense<0.000000e+00> : vector<2x128xf32>
    %325 = tpu.matmul %324, %3, %cst_60 {dimension_numbers = #tpu.dot_dimension_numbers<[1], [0], [0], [1], [0, 0, 1, 1], [], []>} : vector<2x32xbf16>, vector<32x128xbf16>, vector<2x128xf32> -> vector<2x128xf32>
    %326 = arith.addf %323, %325 : vector<2x128xf32>
    %327 = arith.negf %326 : vector<2x128xf32>
    %328 = math.exp %327 : vector<2x128xf32>
    %cst_61 = arith.constant 1.000000e+00 : f32
    %329 = vector.broadcast %cst_61 : f32 to vector<2x128xf32>
    %330 = arith.addf %329, %328 : vector<2x128xf32>
    %331 = arith.divf %329, %330 : vector<2x128xf32>
    %332 = math.tanh %326 : vector<2x128xf32>
    %333 = vector.extract_strided_slice %331 {offsets = [0, 0], sizes = [2, 32], strides = [1, 1]} : vector<2x128xf32> to vector<2x32xf32>
    %334 = vector.extract_strided_slice %331 {offsets = [0, 32], sizes = [2, 32], strides = [1, 1]} : vector<2x128xf32> to vector<2x32xf32>
    %335 = vector.extract_strided_slice %332 {offsets = [0, 64], sizes = [2, 32], strides = [1, 1]} : vector<2x128xf32> to vector<2x32xf32>
    %336 = vector.extract_strided_slice %331 {offsets = [0, 96], sizes = [2, 32], strides = [1, 1]} : vector<2x128xf32> to vector<2x32xf32>
    %337 = arith.mulf %334, %297 : vector<2x32xf32>
    %338 = arith.mulf %333, %335 : vector<2x32xf32>
    %339 = arith.addf %337, %338 : vector<2x32xf32>
    %340 = math.tanh %339 : vector<2x32xf32>
    %341 = arith.mulf %336, %340 : vector<2x32xf32>
    %342 = arith.truncf %341 : vector<2x32xf32> to vector<2x32xbf16>
    %cst_62 = arith.constant dense<0.000000e+00> : vector<2x16xf32>
    %343 = tpu.matmul %342, %6, %cst_62 {dimension_numbers = #tpu.dot_dimension_numbers<[1], [0], [0], [1], [0, 0, 1, 1], [], []>} : vector<2x32xbf16>, vector<32x16xbf16>, vector<2x16xf32> -> vector<2x16xf32>
    %344 = tpu.concatenate %49, %91, %133, %175, %217, %259, %301, %343 in 1 : vector<2x16xf32>, vector<2x16xf32>, vector<2x16xf32>, vector<2x16xf32>, vector<2x16xf32>, vector<2x16xf32>, vector<2x16xf32>, vector<2x16xf32> -> vector<2x128xf32>
    %c0_63 = arith.constant 0 : index
    %c0_64 = arith.constant 0 : index
    %345 = vector.load %arg9[%c0_63, %c0_64] : memref<1x128xf32, #tpu.memory_space<vmem>>, vector<1x128xf32>
    %346 = vector.broadcast %345 : vector<1x128xf32> to vector<2x128xf32>
    %347 = arith.addf %344, %346 : vector<2x128xf32>
    %c0_65 = arith.constant 0 : index
    %c0_66 = arith.constant 0 : index
    %348 = vector.load %arg10[%c0_65, %c0_66] : memref<2x128xf32, #tpu.memory_space<vmem>>, vector<2x128xf32>
    tpu.vector_store %arg10[%c0_65, %c0_66], %347 {strides = array<i32>} : memref<2x128xf32, #tpu.memory_space<vmem>>, vector<2x128xf32>,
    return
  }
  func.func @transform_0(%arg0: i32) -> (i32, i32) {
    %c0_i32 = arith.constant 0 : i32
    %c0_i32_0 = arith.constant 0 : i32
    return %arg0, %c0_i32 : i32, i32
  }
  func.func @transform_1(%arg0: i32) -> (i32, i32) {
    %c0_i32 = arith.constant 0 : i32
    %c0_i32_0 = arith.constant 0 : i32
    %c0_i32_1 = arith.constant 0 : i32
    return %c0_i32, %c0_i32_0 : i32, i32
  }
  func.func @transform_2(%arg0: i32) -> (i32, i32) {
    %c0_i32 = arith.constant 0 : i32
    %c0_i32_0 = arith.constant 0 : i32
    %c0_i32_1 = arith.constant 0 : i32
    return %c0_i32, %c0_i32_0 : i32, i32
  }
  func.func @transform_3(%arg0: i32) -> (i32, i32) {
    %c0_i32 = arith.constant 0 : i32
    %c0_i32_0 = arith.constant 0 : i32
    %c0_i32_1 = arith.constant 0 : i32
    return %c0_i32, %c0_i32_0 : i32, i32
  }
  func.func @transform_4(%arg0: i32) -> (i32, i32) {
    %c0_i32 = arith.constant 0 : i32
    %c0_i32_0 = arith.constant 0 : i32
    %c0_i32_1 = arith.constant 0 : i32
    return %c0_i32, %c0_i32_0 : i32, i32
  }
  func.func @transform_5(%arg0: i32) -> (i32, i32) {
    %c0_i32 = arith.constant 0 : i32
    %c0_i32_0 = arith.constant 0 : i32
    %c0_i32_1 = arith.constant 0 : i32
    return %c0_i32, %c0_i32_0 : i32, i32
  }
  func.func @transform_6(%arg0: i32) -> (i32, i32) {
    %c0_i32 = arith.constant 0 : i32
    %c0_i32_0 = arith.constant 0 : i32
    %c0_i32_1 = arith.constant 0 : i32
    return %c0_i32, %c0_i32_0 : i32, i32
  }
  func.func @transform_7(%arg0: i32) -> (i32, i32) {
    %c0_i32 = arith.constant 0 : i32
    %c0_i32_0 = arith.constant 0 : i32
    %c0_i32_1 = arith.constant 0 : i32
    return %c0_i32, %c0_i32_0 : i32, i32
  }
  func.func @transform_8(%arg0: i32) -> (i32, i32) {
    %c0_i32 = arith.constant 0 : i32
    %c0_i32_0 = arith.constant 0 : i32
    %c0_i32_1 = arith.constant 0 : i32
    return %c0_i32, %c0_i32_0 : i32, i32
  }
  func.func @transform_9(%arg0: i32) -> (i32, i32) {
    %c0_i32 = arith.constant 0 : i32
    %c0_i32_0 = arith.constant 0 : i32
    return %arg0, %c0_i32 : i32, i32
  }
}

</mosaic_0001>

<llo_original>
// kernel: decoder_forward.1
$region0: #{decoder_forward.1}
  #allocation0 [shape = 'u32[]', space=smem, size = 0x4, offset = 0x4, fixed_abs, tag = 'smem constant byte address 0x4 - core index']
  #allocation1 [shape = 'u32[144,128]{1,0:T(1,128)}', space=vmem, size = 0x12000, scoped, tag = 'internal scratch']
  %s0 = inlined_call_operand.vmem [shape: f32[2,32], index: 0, kind: input, shape index: {}]
  %s1 = inlined_call_operand.vmem [shape: bf16[32,128], index: 1, kind: input, shape index: {}]
  %s2 = inlined_call_operand.vmem [shape: bf16[32,128], index: 2, kind: input, shape index: {}]
  %s3 = inlined_call_operand.hbm [shape: f32[1,128], index: 3, kind: input, shape index: {}]
  %s4 = inlined_call_operand.vmem [shape: bf16[32,128], index: 4, kind: input, shape index: {}]
  %s5 = inlined_call_operand.hbm [shape: bf16[32,128], index: 5, kind: input, shape index: {}]
  %s6 = inlined_call_operand.vmem [shape: f32[1,128], index: 6, kind: input, shape index: {}]
  %s7 = inlined_call_operand.vmem [shape: bf16[32,16], index: 7, kind: input, shape index: {}]
  %s8 = inlined_call_operand.hbm [shape: f32[1,128], index: 8, kind: input, shape index: {}]
  %s9 = inlined_call_operand.vmem [shape: f32[2,128], index: 9, kind: output, shape index: {}]
  %s10 = sld [smem:[#allocation0]]
  $region58: #{decoder_forward.1} parent=0
    _
  %s12 = ssub.s32 1, %s10
  %s13 = scalar_select 0, %s12, %s10
  $region1: #{decoder_forward.1} parent=0
    #allocation2 [shape = 'u8[512]{0}', space=vmem, size = 0x400, scoped, tag = 'input window, operand 3, single buffered']
    #allocation3 [shape = 's32[1]{0}', space=sflag, size = 0x4, scoped, tag = 'scoped memory for decoder_forward.1']
    #allocation4 [shape = 'u8[8192]{0}', space=vmem, size = 0x2000, scoped, tag = 'input window, operand 5, single buffered']
    #allocation5 [shape = 's32[1]{0}', space=sflag, size = 0x4, scoped, tag = 'scoped memory for decoder_forward.1']
    #allocation6 [shape = 'u8[512]{0}', space=vmem, size = 0x400, scoped, tag = 'input window, operand 8, single buffered']
    %14 = vsyncpa [#allocation3], 0
    %15 = vsyncpa [#allocation5], 0
    // Predicated region
    $region2: #{decoder_forward.1} parent=1 // pred_check
      _
    $region3: #{decoder_forward.1} parent=1 // pred_check_branch
      %17 = sbr.rel (0) target = $region5
    $region4: #{decoder_forward.1} parent=1 // pred_region
      _
    $region5: #{decoder_forward.1} parent=1 // pred_fallthru
      _
    // Predicated region
    $region6: #{decoder_forward.1} parent=1 // pred_check
      _
    $region7: #{decoder_forward.1} parent=1 // pred_check_branch
      %19 = sbr.rel (0) target = $region9
    $region8: #{decoder_forward.1} parent=1 // pred_region
      _
    $region9: #{decoder_forward.1} parent=1 // pred_fallthru
      _
    // Predicated region
    $region10: #{decoder_forward.1} parent=1 // pred_check
      _
    $region11: #{decoder_forward.1} parent=1 // pred_check_branch
      %21 = sbr.rel (0) target = $region13
    $region12: #{decoder_forward.1} parent=1 // pred_region
      _
    $region13: #{decoder_forward.1} parent=1 // pred_fallthru
      _
    // Predicated region
    $region14: #{decoder_forward.1} parent=1 // pred_check
      _
    $region15: #{decoder_forward.1} parent=1 // pred_check_branch
      %23 = sbr.rel (0) target = $region17
    $region16: #{decoder_forward.1} parent=1 // pred_region
      %s25 = ssub.s32 16, 16
      %26 = vsyncadd [#allocation3], %s25
      %s28 = sshll.u32 [#allocation2], 4
      %s29 = int_to_ptr.vmem [resolvable:$true] %s28
      %31 = dma.hbm_to_vmem [thread:$0]  %s3, 16, %s29, [#allocation3]
    $region17: #{decoder_forward.1} parent=1 // pred_fallthru
      _
    // Predicated region
    $region18: #{decoder_forward.1} parent=1 // pred_check
      _
    $region19: #{decoder_forward.1} parent=1 // pred_check_branch
      %33 = sbr.rel (0) target = $region21
    $region20: #{decoder_forward.1} parent=1 // pred_region
      _
    $region21: #{decoder_forward.1} parent=1 // pred_fallthru
      _
    // Predicated region
    $region22: #{decoder_forward.1} parent=1 // pred_check
      _
    $region23: #{decoder_forward.1} parent=1 // pred_check_branch
      %35 = sbr.rel (0) target = $region25
    $region24: #{decoder_forward.1} parent=1 // pred_region
      %s37 = ssub.s32 256, 256
      %38 = vsyncadd [#allocation5], %s37
      %s39 = sshll.u32 [#allocation4], 4
      %s40 = int_to_ptr.vmem [resolvable:$true] %s39
      %45 = dma.hbm_to_vmem [thread:$0]  %s5, 256, %s40, [#allocation5], 64, 64, 4
    $region25: #{decoder_forward.1} parent=1 // pred_fallthru
      _
    // Predicated region
    $region26: #{decoder_forward.1} parent=1 // pred_check
      _
    $region27: #{decoder_forward.1} parent=1 // pred_check_branch
      %47 = sbr.rel (0) target = $region29
    $region28: #{decoder_forward.1} parent=1 // pred_region
      _
    $region29: #{decoder_forward.1} parent=1 // pred_fallthru
      _
    // Predicated region
    $region30: #{decoder_forward.1} parent=1 // pred_check
      _
    $region31: #{decoder_forward.1} parent=1 // pred_check_branch
      %49 = sbr.rel (0) target = $region33
    $region32: #{decoder_forward.1} parent=1 // pred_region
      _
    $region33: #{decoder_forward.1} parent=1 // pred_fallthru
      _
    // Predicated region
    $region34: #{decoder_forward.1} parent=1 // pred_check
      _
    $region35: #{decoder_forward.1} parent=1 // pred_check_branch
      %51 = sbr.rel (0) target = $region37
    $region36: #{decoder_forward.1} parent=1 // pred_region
      %s53 = ssub.s32 16, 16
      %54 = vsyncadd [#allocation5], %s53
      %s56 = sshll.u32 [#allocation6], 4
      %s57 = int_to_ptr.vmem [resolvable:$true] %s56
      %59 = dma.hbm_to_vmem [thread:$0]  %s8, 16, %s57, [#allocation5]
    $region37: #{decoder_forward.1} parent=1 // pred_fallthru
      _
    // Predicated region
    $region38: #{decoder_forward.1} parent=1 // pred_check
      _
    $region39: #{decoder_forward.1} parent=1 // pred_check_branch
      %61 = sbr.rel (0) target = $region41
    $region40: #{decoder_forward.1} parent=1 // pred_region
      %62 = dma.done [#allocation3], 16
    $region41: #{decoder_forward.1} parent=1 // pred_fallthru
      _
    // Predicated region
    $region42: #{decoder_forward.1} parent=1 // pred_check
      _
    $region43: #{decoder_forward.1} parent=1 // pred_check_branch
      %64 = sbr.rel (0) target = $region45
    $region44: #{decoder_forward.1} parent=1 // pred_region
      %65 = dma.done [#allocation5], 256
    $region45: #{decoder_forward.1} parent=1 // pred_fallthru
      _
    // Predicated region
    $region46: #{decoder_forward.1} parent=1 // pred_check
      _
    $region47: #{decoder_forward.1} parent=1 // pred_check_branch
      %67 = sbr.rel (0) target = $region49
    $region48: #{decoder_forward.1} parent=1 // pred_region
      %68 = dma.done [#allocation5], 16
    $region49: #{decoder_forward.1} parent=1 // pred_fallthru
      _
    %v70 = vld [vmem:[%s1] sm:$0xf]
    %v71 = vld [vmem:[%s1 + $0x4] sm:$0xf]
    %v72 = vld [vmem:[%s1 + $0x8] sm:$0xf]
    %v73 = vld [vmem:[%s1 + $0xc] sm:$0xf]
    %v74 = vld [vmem:[%s4] sm:$0xf]
    %v75 = vld [vmem:[%s4 + $0x4] sm:$0xf]
    %v76 = vld [vmem:[%s4 + $0x8] sm:$0xf]
    %v77 = vld [vmem:[%s4 + $0xc] sm:$0xf]
    %v78 = vld [vmem:[%s2] sm:$0xf]
    %v79 = vld [vmem:[%s2 + $0x4] sm:$0xf]
    %v80 = vld [vmem:[%s2 + $0x8] sm:$0xf]
    %v81 = vld [vmem:[%s2 + $0xc] sm:$0xf]
    %v82 = vld [vmem:[#allocation4] sm:$0xf]
    %v83 = vld [vmem:[#allocation4 + $0x4] sm:$0xf]
    %v84 = vld [vmem:[#allocation4 + $0x8] sm:$0xf]
    %v85 = vld [vmem:[#allocation4 + $0xc] sm:$0xf]
    %v86 = vld [vmem:[#allocation2] sm:$0x1]
    %v87 = vld [vmem:[%s6] sm:$0x1]
    %v88 = vld [vmem:[%s7] sm:$0xf]
    %v89 = vld [vmem:[%s7 + $0x4] sm:$0xf]
    %v90 = vld [vmem:[%s7 + $0x8] sm:$0xf]
    %v91 = vld [vmem:[%s7 + $0xc] sm:$0xf]
    %v92 = vld [vmem:[%s0] sm:$0x3]
    %v93 = vpack.c.bf16 %v92, %v92
    %v95 = vlaneseq
    %v96 = vshrl.u32 %v95, 7
    %v97 = vsub.s32 0, %v96
    %v98 = vrot.slane %v86, %v97
    %v104 = vunpack.c.l.b16 %v70
    %v105 = vunpack.c.l.b16 %v71
    %v106 = vunpack.c.l.b16 %v72
    %v107 = vunpack.c.l.b16 %v73
    %v108 = vpack.c.b16 %v105, %v104
    %v109 = vpack.c.b16 %v107, %v106
    %vm112 = vcmask 261120
    %v114 = vsel %vm112, %v93, 0
    %116 = vmatprep.subr.bf16.mxu0 0
    %117 = vmatpush1.bf16.msra.mxu0 %v108
    %118 = vmatprep.subr.bf16.mxu0 0
    %119 = vmatpush1.bf16.msra.mxu0 %v109
    %120 = vmatprep.subr.bf16.mxu0 0
    %121 = vmatpush1.bf16.msra.mxu0 0
    %122 = vmatprep.subr.bf16.mxu0 0
    %123 = vmatpush1.bf16.msra.mxu0 0
    %124 = vmatprep.subr.bf16.mxu0 0
    %125 = vmatpush1.bf16.msra.mxu0 0
    %126 = vmatprep.subr.bf16.mxu0 0
    %127 = vmatpush1.bf16.msra.mxu0 0
    %128 = vmatprep.subr.bf16.mxu0 0
    %129 = vmatpush1.bf16.msra.mxu0 0
    %130 = vmatprep.subr.bf16.mxu0 0
    %131 = vmatpush1.bf16.msra.mxu0 0
    %132 = vmatprep.subr.bf16.mxu0 0
    %133 = vmatpush1.bf16.msra.mxu0 0
    %134 = vmatprep.subr.bf16.mxu0 0
    %135 = vmatpush1.bf16.msra.mxu0 0
    %136 = vmatprep.subr.bf16.mxu0 0
    %137 = vmatpush1.bf16.msra.mxu0 0
    %138 = vmatprep.subr.bf16.mxu0 0
    %139 = vmatpush1.bf16.msra.mxu0 0
    %140 = vmatprep.subr.bf16.mxu0 0
    %141 = vmatpush1.bf16.msra.mxu0 0
    %142 = vmatprep.subr.bf16.mxu0 0
    %143 = vmatpush1.bf16.msra.mxu0 0
    %144 = vmatprep.subr.bf16.mxu0 0
    %145 = vmatpush1.bf16.msra.mxu0 0
    %146 = vmatprep.subr.bf16.mxu0 0
    %147 = vmatpush1.bf16.msra.mxu0 0
    %148 = vmatprep.mubr.bf16.mxu0 0
    %149 = vmatmul.mubr.bf16.gmra.mrb[0].mxu0 %v114
    %v150 = vpop.f32.mrb[0].mxu0
    %v151 = vadd.f32 %v98, %v150
    %v152 = vpop.f32.mrb[0].mxu0
    %v153 = vpop.f32.mrb[0].mxu0
    %v154 = vpop.f32.mrb[0].mxu0
    %155 = vdwg.mxu0
    %v156 = vxor.u32 %v151, 2147483648
    %v157 = vmul.f32 %v156, 1.442695
    %v158 = vpow.pop %v157
    %v159 = vadd.f32 %v158, 1.0
    %v160 = vrcp.pop %v159
    %v161 = vmul.f32 1.0, %v160
    %v162 = vtanh.pop %v151
    %v163 = vmul.f32 %v161, 0.0
    %165 = vrot.lane.b32.xlu0 %v162, 64
    %v166 = vpop.permute.xlu0 %165
    %v168 = vmul.f32 %v161, %v166
    %170 = vrot.lane.b32.xlu0 %v168, 32
    %v171 = vpop.permute.xlu0 %170
    %v173 = vadd.f32 %v163, %v171
    %v174 = vtanh.pop %v173
    %176 = vrot.lane.b32.xlu0 %v174, 64
    %v177 = vpop.permute.xlu0 %176
    %v179 = vmul.f32 %v161, %v177
    %v180 = vpack.c.bf16 %v179, %v179
    %v182 = vlaneseq
    %v183 = vshrl.u32 %v182, 7
    %v184 = vsub.s32 0, %v183
    %v185 = vrot.slane %v87, %v184
    %188 = vrot.lane.b32.xlu0 %v180, 32
    %v189 = vpop.permute.xlu0 %188
    %v194 = vunpack.c.l.b16 %v74
    %v195 = vunpack.c.l.b16 %v75
    %v196 = vunpack.c.l.b16 %v76
    %v197 = vunpack.c.l.b16 %v77
    %v198 = vpack.c.b16 %v195, %v194
    %v199 = vpack.c.b16 %v197, %v196
    %v203 = vsel %vm112, %v189, 0
    %205 = vmatprep.subr.bf16.mxu0 0
    %206 = vmatpush1.bf16.msra.mxu0 %v198
    %207 = vmatprep.subr.bf16.mxu0 0
    %208 = vmatpush1.bf16.msra.mxu0 %v199
    %209 = vmatprep.subr.bf16.mxu0 0
    %210 = vmatpush1.bf16.msra.mxu0 0
    %211 = vmatprep.subr.bf16.mxu0 0
    %212 = vmatpush1.bf16.msra.mxu0 0
    %213 = vmatprep.subr.bf16.mxu0 0
    %214 = vmatpush1.bf16.msra.mxu0 0
    %215 = vmatprep.subr.bf16.mxu0 0
    %216 = vmatpush1.bf16.msra.mxu0 0
    %217 = vmatprep.subr.bf16.mxu0 0
    %218 = vmatpush1.bf16.msra.mxu0 0
    %219 = vmatprep.subr.bf16.mxu0 0
    %220 = vmatpush1.bf16.msra.mxu0 0
    %221 = vmatprep.subr.bf16.mxu0 0
    %222 = vmatpush1.bf16.msra.mxu0 0
    %223 = vmatprep.subr.bf16.mxu0 0
    %224 = vmatpush1.bf16.msra.mxu0 0
    %225 = vmatprep.subr.bf16.mxu0 0
    %226 = vmatpush1.bf16.msra.mxu0 0
    %227 = vmatprep.subr.bf16.mxu0 0
    %228 = vmatpush1.bf16.msra.mxu0 0
    %229 = vmatprep.subr.bf16.mxu0 0
    %230 = vmatpush1.bf16.msra.mxu0 0
    %231 = vmatprep.subr.bf16.mxu0 0
    %232 = vmatpush1.bf16.msra.mxu0 0
    %233 = vmatprep.subr.bf16.mxu0 0
    %234 = vmatpush1.bf16.msra.mxu0 0
    %235 = vmatprep.subr.bf16.mxu0 0
    %236 = vmatpush1.bf16.msra.mxu0 0
    %237 = vmatprep.mubr.bf16.mxu0 0
    %238 = vmatmul.mubr.bf16.gmra.mrb[0].mxu0 %v203
    %v239 = vpop.f32.mrb[0].mxu0
    %v240 = vadd.f32 %v185, %v239
    %v241 = vpop.f32.mrb[0].mxu0
    %v242 = vpop.f32.mrb[0].mxu0
    %v243 = vpop.f32.mrb[0].mxu0
    %244 = vdwg.mxu0
    %v245 = vxor.u32 %v240, 2147483648
    %v246 = vmul.f32 %v245, 1.442695
    %v247 = vpow.pop %v246
    %v248 = vadd.f32 %v247, 1.0
    %v249 = vrcp.pop %v248
    %v250 = vmul.f32 1.0, %v249
    %v251 = vtanh.pop %v240
    %v252 = vmul.f32 %v250, 0.0
    %254 = vrot.lane.b32.xlu0 %v251, 64
    %v255 = vpop.permute.xlu0 %254
    %v257 = vmul.f32 %v250, %v255
    %259 = vrot.lane.b32.xlu0 %v257, 32
    %v260 = vpop.permute.xlu0 %259
    %v262 = vadd.f32 %v252, %v260
    %v263 = vtanh.pop %v262
    %265 = vrot.lane.b32.xlu0 %v263, 64
    %v266 = vpop.permute.xlu0 %265
    %v268 = vmul.f32 %v250, %v266
    %v269 = vpack.c.bf16 %v268, %v268
    %271 = vrot.lane.b32.xlu0 %v269, 32
    %v272 = vpop.permute.xlu0 %271
    %v277 = vunpack.c.l.b16 %v88
    %v278 = vunpack.c.l.b16 %v89
    %v279 = vunpack.c.l.b16 %v90
    %v280 = vunpack.c.l.b16 %v91
    %v281 = vpack.c.b16 %v278, %v277
    %v282 = vpack.c.b16 %v280, %v279
    %v286 = vsel %vm112, %v272, 0
    %288 = vmatprep.subr.bf16.mxu0 0
    %289 = vmatpush1.bf16.msra.mxu0 %v281
    %290 = vmatprep.subr.bf16.mxu0 0
    %291 = vmatpush1.bf16.msra.mxu0 %v282
    %292 = vmatprep.subr.bf16.mxu0 0
    %293 = vmatpush1.bf16.msra.mxu0 0
    %294 = vmatprep.subr.bf16.mxu0 0
    %295 = vmatpush1.bf16.msra.mxu0 0
    %296 = vmatprep.subr.bf16.mxu0 0
    %297 = vmatpush1.bf16.msra.mxu0 0
    %298 = vmatprep.subr.bf16.mxu0 0
    %299 = vmatpush1.bf16.msra.mxu0 0
    %300 = vmatprep.subr.bf16.mxu0 0
    %301 = vmatpush1.bf16.msra.mxu0 0
    %302 = vmatprep.subr.bf16.mxu0 0
    %303 = vmatpush1.bf16.msra.mxu0 0
    %304 = vmatprep.subr.bf16.mxu0 0
    %305 = vmatpush1.bf16.msra.mxu0 0
    %306 = vmatprep.subr.bf16.mxu0 0
    %307 = vmatpush1.bf16.msra.mxu0 0
    %308 = vmatprep.subr.bf16.mxu0 0
    %309 = vmatpush1.bf16.msra.mxu0 0
    %310 = vmatprep.subr.bf16.mxu0 0
    %311 = vmatpush1.bf16.msra.mxu0 0
    %312 = vmatprep.subr.bf16.mxu0 0
    %313 = vmatpush1.bf16.msra.mxu0 0
    %314 = vmatprep.subr.bf16.mxu0 0
    %315 = vmatpush1.bf16.msra.mxu0 0
    %316 = vmatprep.subr.bf16.mxu0 0
    %317 = vmatpush1.bf16.msra.mxu0 0
    %318 = vmatprep.subr.bf16.mxu0 0
    %319 = vmatpush1.bf16.msra.mxu0 0
    %320 = vmatprep.mubr.bf16.mxu0 0
    %321 = vmatmul.mubr.bf16.gmra.mrb[0].mxu0 %v286
    %v322 = vpop.f32.mrb[0].mxu0
    %v323 = vadd.f32 0.0, %v322
    %v324 = vpop.f32.mrb[0].mxu0
    %v325 = vpop.f32.mrb[0].mxu0
    %v326 = vpop.f32.mrb[0].mxu0
    %327 = vdwg.mxu0
    %v332 = vunpack.c.l.b16 %v78
    %v333 = vunpack.c.l.b16 %v79
    %v334 = vunpack.c.l.b16 %v80
    %v335 = vunpack.c.l.b16 %v81
    %v336 = vpack.c.b16 %v333, %v332
    %v337 = vpack.c.b16 %v335, %v334
    %340 = vmatprep.subr.bf16.mxu0 0
    %341 = vmatpush1.bf16.msra.mxu0 %v336
    %342 = vmatprep.subr.bf16.mxu0 0
    %343 = vmatpush1.bf16.msra.mxu0 %v337
    %344 = vmatprep.subr.bf16.mxu0 0
    %345 = vmatpush1.bf16.msra.mxu0 0
    %346 = vmatprep.subr.bf16.mxu0 0
    %347 = vmatpush1.bf16.msra.mxu0 0
    %348 = vmatprep.subr.bf16.mxu0 0
    %349 = vmatpush1.bf16.msra.mxu0 0
    %350 = vmatprep.subr.bf16.mxu0 0
    %351 = vmatpush1.bf16.msra.mxu0 0
    %352 = vmatprep.subr.bf16.mxu0 0
    %353 = vmatpush1.bf16.msra.mxu0 0
    %354 = vmatprep.subr.bf16.mxu0 0
    %355 = vmatpush1.bf16.msra.mxu0 0
    %356 = vmatprep.subr.bf16.mxu0 0
    %357 = vmatpush1.bf16.msra.mxu0 0
    %358 = vmatprep.subr.bf16.mxu0 0
    %359 = vmatpush1.bf16.msra.mxu0 0
    %360 = vmatprep.subr.bf16.mxu0 0
    %361 = vmatpush1.bf16.msra.mxu0 0
    %362 = vmatprep.subr.bf16.mxu0 0
    %363 = vmatpush1.bf16.msra.mxu0 0
    %364 = vmatprep.subr.bf16.mxu0 0
    %365 = vmatpush1.bf16.msra.mxu0 0
    %366 = vmatprep.subr.bf16.mxu0 0
    %367 = vmatpush1.bf16.msra.mxu0 0
    %368 = vmatprep.subr.bf16.mxu0 0
    %369 = vmatpush1.bf16.msra.mxu0 0
    %370 = vmatprep.subr.bf16.mxu0 0
    %371 = vmatpush1.bf16.msra.mxu0 0
    %372 = vmatprep.mubr.bf16.mxu0 0
    %373 = vmatmul.mubr.bf16.gmra.mrb[0].mxu0 %v203
    %v374 = vpop.f32.mrb[0].mxu0
    %v375 = vadd.f32 0.0, %v374
    %v376 = vpop.f32.mrb[0].mxu0
    %v377 = vpop.f32.mrb[0].mxu0
    %v378 = vpop.f32.mrb[0].mxu0
    %379 = vdwg.mxu0
    %v380 = vadd.f32 %v151, %v375
    %v381 = vxor.u32 %v380, 2147483648
    %v382 = vmul.f32 %v381, 1.442695
    %v383 = vpow.pop %v382
    %v384 = vadd.f32 %v383, 1.0
    %v385 = vrcp.pop %v384
    %v386 = vmul.f32 1.0, %v385
    %v387 = vtanh.pop %v380
    %v388 = vmul.f32 %v386, %v173
    %390 = vrot.lane.b32.xlu0 %v387, 64
    %v391 = vpop.permute.xlu0 %390
    %v393 = vmul.f32 %v386, %v391
    %395 = vrot.lane.b32.xlu0 %v393, 32
    %v396 = vpop.permute.xlu0 %395
    %v398 = vadd.f32 %v388, %v396
    %v399 = vtanh.pop %v398
    %401 = vrot.lane.b32.xlu0 %v399, 64
    %v402 = vpop.permute.xlu0 %401
    %v404 = vmul.f32 %v386, %v402
    %v405 = vpack.c.bf16 %v404, %v404
    %407 = vrot.lane.b32.xlu0 %v405, 32
    %v408 = vpop.permute.xlu0 %407
    %v410 = vsel %vm112, %v408, 0
    %412 = vmatprep.subr.bf16.mxu0 0
    %413 = vmatpush1.bf16.msra.mxu0 %v198
    %414 = vmatprep.subr.bf16.mxu0 0
    %415 = vmatpush1.bf16.msra.mxu0 %v199
    %416 = vmatprep.subr.bf16.mxu0 0
    %417 = vmatpush1.bf16.msra.mxu0 0
    %418 = vmatprep.subr.bf16.mxu0 0
    %419 = vmatpush1.bf16.msra.mxu0 0
    %420 = vmatprep.subr.bf16.mxu0 0
    %421 = vmatpush1.bf16.msra.mxu0 0
    %422 = vmatprep.subr.bf16.mxu0 0
    %423 = vmatpush1.bf16.msra.mxu0 0
    %424 = vmatprep.subr.bf16.mxu0 0
    %425 = vmatpush1.bf16.msra.mxu0 0
    %426 = vmatprep.subr.bf16.mxu0 0
    %427 = vmatpush1.bf16.msra.mxu0 0
    %428 = vmatprep.subr.bf16.mxu0 0
    %429 = vmatpush1.bf16.msra.mxu0 0
    %430 = vmatprep.subr.bf16.mxu0 0
    %431 = vmatpush1.bf16.msra.mxu0 0
    %432 = vmatprep.subr.bf16.mxu0 0
    %433 = vmatpush1.bf16.msra.mxu0 0
    %434 = vmatprep.subr.bf16.mxu0 0
    %435 = vmatpush1.bf16.msra.mxu0 0
    %436 = vmatprep.subr.bf16.mxu0 0
    %437 = vmatpush1.bf16.msra.mxu0 0
    %438 = vmatprep.subr.bf16.mxu0 0
    %439 = vmatpush1.bf16.msra.mxu0 0
    %440 = vmatprep.subr.bf16.mxu0 0
    %441 = vmatpush1.bf16.msra.mxu0 0
    %442 = vmatprep.subr.bf16.mxu0 0
    %443 = vmatpush1.bf16.msra.mxu0 0
    %444 = vmatprep.mubr.bf16.mxu0 0
    %445 = vmatmul.mubr.bf16.gmra.mrb[0].mxu0 %v410
    %v446 = vpop.f32.mrb[0].mxu0
    %v447 = vadd.f32 %v185, %v446
    %v448 = vpop.f32.mrb[0].mxu0
    %v449 = vpop.f32.mrb[0].mxu0
    %v450 = vpop.f32.mrb[0].mxu0
    %451 = vdwg.mxu0
    %v456 = vunpack.c.l.b16 %v82
    %v457 = vunpack.c.l.b16 %v83
    %v458 = vunpack.c.l.b16 %v84
    %v459 = vunpack.c.l.b16 %v85
    %v460 = vpack.c.b16 %v457, %v456
    %v461 = vpack.c.b16 %v459, %v458
    %464 = vmatprep.subr.bf16.mxu0 0
    %465 = vmatpush1.bf16.msra.mxu0 %v460
    %466 = vmatprep.subr.bf16.mxu0 0
    %467 = vmatpush1.bf16.msra.mxu0 %v461
    %468 = vmatprep.subr.bf16.mxu0 0
    %469 = vmatpush1.bf16.msra.mxu0 0
    %470 = vmatprep.subr.bf16.mxu0 0
    %471 = vmatpush1.bf16.msra.mxu0 0
    %472 = vmatprep.subr.bf16.mxu0 0
    %473 = vmatpush1.bf16.msra.mxu0 0
    %474 = vmatprep.subr.bf16.mxu0 0
    %475 = vmatpush1.bf16.msra.mxu0 0
    %476 = vmatprep.subr.bf16.mxu0 0
    %477 = vmatpush1.bf16.msra.mxu0 0
    %478 = vmatprep.subr.bf16.mxu0 0
    %479 = vmatpush1.bf16.msra.mxu0 0
    %480 = vmatprep.subr.bf16.mxu0 0
    %481 = vmatpush1.bf16.msra.mxu0 0
    %482 = vmatprep.subr.bf16.mxu0 0
    %483 = vmatpush1.bf16.msra.mxu0 0
    %484 = vmatprep.subr.bf16.mxu0 0
    %485 = vmatpush1.bf16.msra.mxu0 0
    %486 = vmatprep.subr.bf16.mxu0 0
    %487 = vmatpush1.bf16.msra.mxu0 0
    %488 = vmatprep.subr.bf16.mxu0 0
    %489 = vmatpush1.bf16.msra.mxu0 0
    %490 = vmatprep.subr.bf16.mxu0 0
    %491 = vmatpush1.bf16.msra.mxu0 0
    %492 = vmatprep.subr.bf16.mxu0 0
    %493 = vmatpush1.bf16.msra.mxu0 0
    %494 = vmatprep.subr.bf16.mxu0 0
    %495 = vmatpush1.bf16.msra.mxu0 0
    %496 = vmatprep.mubr.bf16.mxu0 0
    %497 = vmatmul.mubr.bf16.gmra.mrb[0].mxu0 %v286
    %v498 = vpop.f32.mrb[0].mxu0
    %v499 = vadd.f32 0.0, %v498
    %v500 = vpop.f32.mrb[0].mxu0
    %v501 = vpop.f32.mrb[0].mxu0
    %v502 = vpop.f32.mrb[0].mxu0
    %503 = vdwg.mxu0
    %v504 = vadd.f32 %v447, %v499
    %v505 = vxor.u32 %v504, 2147483648
    %v506 = vmul.f32 %v505, 1.442695
    %v507 = vpow.pop %v506
    %v508 = vadd.f32 %v507, 1.0
    %v509 = vrcp.pop %v508
    %v510 = vmul.f32 1.0, %v509
    %v511 = vtanh.pop %v504
    %v512 = vmul.f32 %v510, %v262
    %514 = vrot.lane.b32.xlu0 %v511, 64
    %v515 = vpop.permute.xlu0 %514
    %v517 = vmul.f32 %v510, %v515
    %519 = vrot.lane.b32.xlu0 %v517, 32
    %v520 = vpop.permute.xlu0 %519
    %v522 = vadd.f32 %v512, %v520
    %v523 = vtanh.pop %v522
    %525 = vrot.lane.b32.xlu0 %v523, 64
    %v526 = vpop.permute.xlu0 %525
    %v528 = vmul.f32 %v510, %v526
    %v529 = vpack.c.bf16 %v528, %v528
    %531 = vrot.lane.b32.xlu0 %v529, 32
    %v532 = vpop.permute.xlu0 %531
    %v534 = vsel %vm112, %v532, 0
    %536 = vmatprep.subr.bf16.mxu0 0
    %537 = vmatpush1.bf16.msra.mxu0 %v281
    %538 = vmatprep.subr.bf16.mxu0 0
    %539 = vmatpush1.bf16.msra.mxu0 %v282
    %540 = vmatprep.subr.bf16.mxu0 0
    %541 = vmatpush1.bf16.msra.mxu0 0
    %542 = vmatprep.subr.bf16.mxu0 0
    %543 = vmatpush1.bf16.msra.mxu0 0
    %544 = vmatprep.subr.bf16.mxu0 0
    %545 = vmatpush1.bf16.msra.mxu0 0
    %546 = vmatprep.subr.bf16.mxu0 0
    %547 = vmatpush1.bf16.msra.mxu0 0
    %548 = vmatprep.subr.bf16.mxu0 0
    %549 = vmatpush1.bf16.msra.mxu0 0
    %550 = vmatprep.subr.bf16.mxu0 0
    %551 = vmatpush1.bf16.msra.mxu0 0
    %552 = vmatprep.subr.bf16.mxu0 0
    %553 = vmatpush1.bf16.msra.mxu0 0
    %554 = vmatprep.subr.bf16.mxu0 0
    %555 = vmatpush1.bf16.msra.mxu0 0
    %556 = vmatprep.subr.bf16.mxu0 0
    %557 = vmatpush1.bf16.msra.mxu0 0
    %558 = vmatprep.subr.bf16.mxu0 0
    %559 = vmatpush1.bf16.msra.mxu0 0
    %560 = vmatprep.subr.bf16.mxu0 0
    %561 = vmatpush1.bf16.msra.mxu0 0
    %562 = vmatprep.subr.bf16.mxu0 0
    %563 = vmatpush1.bf16.msra.mxu0 0
    %564 = vmatprep.subr.bf16.mxu0 0
    %565 = vmatpush1.bf16.msra.mxu0 0
    %566 = vmatprep.subr.bf16.mxu0 0
    %567 = vmatpush1.bf16.msra.mxu0 0
    %568 = vmatprep.mubr.bf16.mxu0 0
    %569 = vmatmul.mubr.bf16.gmra.mrb[0].mxu0 %v534
    %v570 = vpop.f32.mrb[0].mxu0
    %v571 = vadd.f32 0.0, %v570
    %v572 = vpop.f32.mrb[0].mxu0
    %v573 = vpop.f32.mrb[0].mxu0
    %v574 = vpop.f32.mrb[0].mxu0
    %575 = vdwg.mxu0
    %576 = vmatprep.subr.bf16.mxu0 0
    %577 = vmatpush1.bf16.msra.mxu0 %v336
    %578 = vmatprep.subr.bf16.mxu0 0
    %579 = vmatpush1.bf16.msra.mxu0 %v337
    %580 = vmatprep.subr.bf16.mxu0 0
    %581 = vmatpush1.bf16.msra.mxu0 0
    %582 = vmatprep.subr.bf16.mxu0 0
    %583 = vmatpush1.bf16.msra.mxu0 0
    %584 = vmatprep.subr.bf16.mxu0 0
    %585 = vmatpush1.bf16.msra.mxu0 0
    %586 = vmatprep.subr.bf16.mxu0 0
    %587 = vmatpush1.bf16.msra.mxu0 0
    %588 = vmatprep.subr.bf16.mxu0 0
    %589 = vmatpush1.bf16.msra.mxu0 0
    %590 = vmatprep.subr.bf16.mxu0 0
    %591 = vmatpush1.bf16.msra.mxu0 0
    %592 = vmatprep.subr.bf16.mxu0 0
    %593 = vmatpush1.bf16.msra.mxu0 0
    %594 = vmatprep.subr.bf16.mxu0 0
    %595 = vmatpush1.bf16.msra.mxu0 0
    %596 = vmatprep.subr.bf16.mxu0 0
    %597 = vmatpush1.bf16.msra.mxu0 0
    %598 = vmatprep.subr.bf16.mxu0 0
    %599 = vmatpush1.bf16.msra.mxu0 0
    %600 = vmatprep.subr.bf16.mxu0 0
    %601 = vmatpush1.bf16.msra.mxu0 0
    %602 = vmatprep.subr.bf16.mxu0 0
    %603 = vmatpush1.bf16.msra.mxu0 0
    %604 = vmatprep.subr.bf16.mxu0 0
    %605 = vmatpush1.bf16.msra.mxu0 0
    %606 = vmatprep.subr.bf16.mxu0 0
    %607 = vmatpush1.bf16.msra.mxu0 0
    %608 = vmatprep.mubr.bf16.mxu0 0
    %609 = vmatmul.mubr.bf16.gmra.mrb[0].mxu0 %v410
    %v610 = vpop.f32.mrb[0].mxu0
    %v611 = vadd.f32 0.0, %v610
    %v612 = vpop.f32.mrb[0].mxu0
    %v613 = vpop.f32.mrb[0].mxu0
    %v614 = vpop.f32.mrb[0].mxu0
    %615 = vdwg.mxu0
    %v616 = vadd.f32 %v151, %v611
    %v617 = vxor.u32 %v616, 2147483648
    %v618 = vmul.f32 %v617, 1.442695
    %v619 = vpow.pop %v618
    %v620 = vadd.f32 %v619, 1.0
    %v621 = vrcp.pop %v620
    %v622 = vmul.f32 1.0, %v621
    %v623 = vtanh.pop %v616
    %v624 = vmul.f32 %v622, %v398
    %626 = vrot.lane.b32.xlu0 %v623, 64
    %v627 = vpop.permute.xlu0 %626
    %v629 = vmul.f32 %v622, %v627
    %631 = vrot.lane.b32.xlu0 %v629, 32
    %v632 = vpop.permute.xlu0 %631
    %v634 = vadd.f32 %v624, %v632
    %v635 = vtanh.pop %v634
    %637 = vrot.lane.b32.xlu0 %v635, 64
    %v638 = vpop.permute.xlu0 %637
    %v640 = vmul.f32 %v622, %v638
    %v641 = vpack.c.bf16 %v640, %v640
    %643 = vrot.lane.b32.xlu0 %v641, 32
    %v644 = vpop.permute.xlu0 %643
    %v646 = vsel %vm112, %v644, 0
    %648 = vmatprep.subr.bf16.mxu0 0
    %649 = vmatpush1.bf16.msra.mxu0 %v198
    %650 = vmatprep.subr.bf16.mxu0 0
    %651 = vmatpush1.bf16.msra.mxu0 %v199
    %652 = vmatprep.subr.bf16.mxu0 0
    %653 = vmatpush1.bf16.msra.mxu0 0
    %654 = vmatprep.subr.bf16.mxu0 0
    %655 = vmatpush1.bf16.msra.mxu0 0
    %656 = vmatprep.subr.bf16.mxu0 0
    %657 = vmatpush1.bf16.msra.mxu0 0
    %658 = vmatprep.subr.bf16.mxu0 0
    %659 = vmatpush1.bf16.msra.mxu0 0
    %660 = vmatprep.subr.bf16.mxu0 0
    %661 = vmatpush1.bf16.msra.mxu0 0
    %662 = vmatprep.subr.bf16.mxu0 0
    %663 = vmatpush1.bf16.msra.mxu0 0
    %664 = vmatprep.subr.bf16.mxu0 0
    %665 = vmatpush1.bf16.msra.mxu0 0
    %666 = vmatprep.subr.bf16.mxu0 0
    %667 = vmatpush1.bf16.msra.mxu0 0
    %668 = vmatprep.subr.bf16.mxu0 0
    %669 = vmatpush1.bf16.msra.mxu0 0
    %670 = vmatprep.subr.bf16.mxu0 0
    %671 = vmatpush1.bf16.msra.mxu0 0
    %672 = vmatprep.subr.bf16.mxu0 0
    %673 = vmatpush1.bf16.msra.mxu0 0
    %674 = vmatprep.subr.bf16.mxu0 0
    %675 = vmatpush1.bf16.msra.mxu0 0
    %676 = vmatprep.subr.bf16.mxu0 0
    %677 = vmatpush1.bf16.msra.mxu0 0
    %678 = vmatprep.subr.bf16.mxu0 0
    %679 = vmatpush1.bf16.msra.mxu0 0
    %680 = vmatprep.mubr.bf16.mxu0 0
    %681 = vmatmul.mubr.bf16.gmra.mrb[0].mxu0 %v646
    %v682 = vpop.f32.mrb[0].mxu0
    %v683 = vadd.f32 %v185, %v682
    %v684 = vpop.f32.mrb[0].mxu0
    %v685 = vpop.f32.mrb[0].mxu0
    %v686 = vpop.f32.mrb[0].mxu0
    %687 = vdwg.mxu0
    %688 = vmatprep.subr.bf16.mxu0 0
    %689 = vmatpush1.bf16.msra.mxu0 %v460
    %690 = vmatprep.subr.bf16.mxu0 0
    %691 = vmatpush1.bf16.msra.mxu0 %v461
    %692 = vmatprep.subr.bf16.mxu0 0
    %693 = vmatpush1.bf16.msra.mxu0 0
    %694 = vmatprep.subr.bf16.mxu0 0
    %695 = vmatpush1.bf16.msra.mxu0 0
    %696 = vmatprep.subr.bf16.mxu0 0
    %697 = vmatpush1.bf16.msra.mxu0 0
    %698 = vmatprep.subr.bf16.mxu0 0
    %699 = vmatpush1.bf16.msra.mxu0 0
    %700 = vmatprep.subr.bf16.mxu0 0
    %701 = vmatpush1.bf16.msra.mxu0 0
    %702 = vmatprep.subr.bf16.mxu0 0
    %703 = vmatpush1.bf16.msra.mxu0 0
    %704 = vmatprep.subr.bf16.mxu0 0
    %705 = vmatpush1.bf16.msra.mxu0 0
    %706 = vmatprep.subr.bf16.mxu0 0
    %707 = vmatpush1.bf16.msra.mxu0 0
    %708 = vmatprep.subr.bf16.mxu0 0
    %709 = vmatpush1.bf16.msra.mxu0 0
    %710 = vmatprep.subr.bf16.mxu0 0
    %711 = vmatpush1.bf16.msra.mxu0 0
    %712 = vmatprep.subr.bf16.mxu0 0
    %713 = vmatpush1.bf16.msra.mxu0 0
    %714 = vmatprep.subr.bf16.mxu0 0
    %715 = vmatpush1.bf16.msra.mxu0 0
    %716 = vmatprep.subr.bf16.mxu0 0
    %717 = vmatpush1.bf16.msra.mxu0 0
    %718 = vmatprep.subr.bf16.mxu0 0
    %719 = vmatpush1.bf16.msra.mxu0 0
    %720 = vmatprep.mubr.bf16.mxu0 0
    %721 = vmatmul.mubr.bf16.gmra.mrb[0].mxu0 %v534
    %v722 = vpop.f32.mrb[0].mxu0
    %v723 = vadd.f32 0.0, %v722
    %v724 = vpop.f32.mrb[0].mxu0
    %v725 = vpop.f32.mrb[0].mxu0
    %v726 = vpop.f32.mrb[0].mxu0
    %727 = vdwg.mxu0
    %v728 = vadd.f32 %v683, %v723
    %v729 = vxor.u32 %v728, 2147483648
    %v730 = vmul.f32 %v729, 1.442695
    %v731 = vpow.pop %v730
    %v732 = vadd.f32 %v731, 1.0
    %v733 = vrcp.pop %v732
    %v734 = vmul.f32 1.0, %v733
    %v735 = vtanh.pop %v728
    %v736 = vmul.f32 %v734, %v522
    %738 = vrot.lane.b32.xlu0 %v735, 64
    %v739 = vpop.permute.xlu0 %738
    %v741 = vmul.f32 %v734, %v739
    %743 = vrot.lane.b32.xlu0 %v741, 32
    %v744 = vpop.permute.xlu0 %743
    %v746 = vadd.f32 %v736, %v744
    %v747 = vtanh.pop %v746
    %749 = vrot.lane.b32.xlu0 %v747, 64
    %v750 = vpop.permute.xlu0 %749
    %v752 = vmul.f32 %v734, %v750
    %v753 = vpack.c.bf16 %v752, %v752
    %755 = vrot.lane.b32.xlu0 %v753, 32
    %v756 = vpop.permute.xlu0 %755
    %v758 = vsel %vm112, %v756, 0
    %760 = vmatprep.subr.bf16.mxu0 0
    %761 = vmatpush1.bf16.msra.mxu0 %v281
    %762 = vmatprep.subr.bf16.mxu0 0
    %763 = vmatpush1.bf16.msra.mxu0 %v282
    %764 = vmatprep.subr.bf16.mxu0 0
    %765 = vmatpush1.bf16.msra.mxu0 0
    %766 = vmatprep.subr.bf16.mxu0 0
    %767 = vmatpush1.bf16.msra.mxu0 0
    %768 = vmatprep.subr.bf16.mxu0 0
    %769 = vmatpush1.bf16.msra.mxu0 0
    %770 = vmatprep.subr.bf16.mxu0 0
    %771 = vmatpush1.bf16.msra.mxu0 0
    %772 = vmatprep.subr.bf16.mxu0 0
    %773 = vmatpush1.bf16.msra.mxu0 0
    %774 = vmatprep.subr.bf16.mxu0 0
    %775 = vmatpush1.bf16.msra.mxu0 0
    %776 = vmatprep.subr.bf16.mxu0 0
    %777 = vmatpush1.bf16.msra.mxu0 0
    %778 = vmatprep.subr.bf16.mxu0 0
    %779 = vmatpush1.bf16.msra.mxu0 0
    %780 = vmatprep.subr.bf16.mxu0 0
    %781 = vmatpush1.bf16.msra.mxu0 0
    %782 = vmatprep.subr.bf16.mxu0 0
    %783 = vmatpush1.bf16.msra.mxu0 0
    %784 = vmatprep.subr.bf16.mxu0 0
    %785 = vmatpush1.bf16.msra.mxu0 0
    %786 = vmatprep.subr.bf16.mxu0 0
    %787 = vmatpush1.bf16.msra.mxu0 0
    %788 = vmatprep.subr.bf16.mxu0 0
    %789 = vmatpush1.bf16.msra.mxu0 0
    %790 = vmatprep.subr.bf16.mxu0 0
    %791 = vmatpush1.bf16.msra.mxu0 0
    %792 = vmatprep.mubr.bf16.mxu0 0
    %793 = vmatmul.mubr.bf16.gmra.mrb[0].mxu0 %v758
    %v794 = vpop.f32.mrb[0].mxu0
    %v795 = vadd.f32 0.0, %v794
    %v796 = vpop.f32.mrb[0].mxu0
    %v797 = vpop.f32.mrb[0].mxu0
    %v798 = vpop.f32.mrb[0].mxu0
    %799 = vdwg.mxu0
    %800 = vmatprep.subr.bf16.mxu0 0
    %801 = vmatpush1.bf16.msra.mxu0 %v336
    %802 = vmatprep.subr.bf16.mxu0 0
    %803 = vmatpush1.bf16.msra.mxu0 %v337
    %804 = vmatprep.subr.bf16.mxu0 0
    %805 = vmatpush1.bf16.msra.mxu0 0
    %806 = vmatprep.subr.bf16.mxu0 0
    %807 = vmatpush1.bf16.msra.mxu0 0
    %808 = vmatprep.subr.bf16.mxu0 0
    %809 = vmatpush1.bf16.msra.mxu0 0
    %810 = vmatprep.subr.bf16.mxu0 0
    %811 = vmatpush1.bf16.msra.mxu0 0
    %812 = vmatprep.subr.bf16.mxu0 0
    %813 = vmatpush1.bf16.msra.mxu0 0
    %814 = vmatprep.subr.bf16.mxu0 0
    %815 = vmatpush1.bf16.msra.mxu0 0
    %816 = vmatprep.subr.bf16.mxu0 0
    %817 = vmatpush1.bf16.msra.mxu0 0
    %818 = vmatprep.subr.bf16.mxu0 0
    %819 = vmatpush1.bf16.msra.mxu0 0
    %820 = vmatprep.subr.bf16.mxu0 0
    %821 = vmatpush1.bf16.msra.mxu0 0
    %822 = vmatprep.subr.bf16.mxu0 0
    %823 = vmatpush1.bf16.msra.mxu0 0
    %824 = vmatprep.subr.bf16.mxu0 0
    %825 = vmatpush1.bf16.msra.mxu0 0
    %826 = vmatprep.subr.bf16.mxu0 0
    %827 = vmatpush1.bf16.msra.mxu0 0
    %828 = vmatprep.subr.bf16.mxu0 0
    %829 = vmatpush1.bf16.msra.mxu0 0
    %830 = vmatprep.subr.bf16.mxu0 0
    %831 = vmatpush1.bf16.msra.mxu0 0
    %832 = vmatprep.mubr.bf16.mxu0 0
    %833 = vmatmul.mubr.bf16.gmra.mrb[0].mxu0 %v646
    %v834 = vpop.f32.mrb[0].mxu0
    %v835 = vadd.f32 0.0, %v834
    %v836 = vpop.f32.mrb[0].mxu0
    %v837 = vpop.f32.mrb[0].mxu0
    %v838 = vpop.f32.mrb[0].mxu0
    %839 = vdwg.mxu0
    %v840 = vadd.f32 %v151, %v835
    %v841 = vxor.u32 %v840, 2147483648
    %v842 = vmul.f32 %v841, 1.442695
    %v843 = vpow.pop %v842
    %v844 = vadd.f32 %v843, 1.0
    %v845 = vrcp.pop %v844
    %v846 = vmul.f32 1.0, %v845
    %v847 = vtanh.pop %v840
    %v848 = vmul.f32 %v846, %v634
    %850 = vrot.lane.b32.xlu0 %v847, 64
    %v851 = vpop.permute.xlu0 %850
    %v853 = vmul.f32 %v846, %v851
    %855 = vrot.lane.b32.xlu0 %v853, 32
    %v856 = vpop.permute.xlu0 %855
    %v858 = vadd.f32 %v848, %v856
    %v859 = vtanh.pop %v858
    %861 = vrot.lane.b32.xlu0 %v859, 64
    %v862 = vpop.permute.xlu0 %861
    %v864 = vmul.f32 %v846, %v862
    %v865 = vpack.c.bf16 %v864, %v864
    %867 = vrot.lane.b32.xlu0 %v865, 32
    %v868 = vpop.permute.xlu0 %867
    %v870 = vsel %vm112, %v868, 0
    %872 = vmatprep.subr.bf16.mxu0 0
    %873 = vmatpush1.bf16.msra.mxu0 %v198
    %874 = vmatprep.subr.bf16.mxu0 0
    %875 = vmatpush1.bf16.msra.mxu0 %v199
    %876 = vmatprep.subr.bf16.mxu0 0
    %877 = vmatpush1.bf16.msra.mxu0 0
    %878 = vmatprep.subr.bf16.mxu0 0
    %879 = vmatpush1.bf16.msra.mxu0 0
    %880 = vmatprep.subr.bf16.mxu0 0
    %881 = vmatpush1.bf16.msra.mxu0 0
    %882 = vmatprep.subr.bf16.mxu0 0
    %883 = vmatpush1.bf16.msra.mxu0 0
    %884 = vmatprep.subr.bf16.mxu0 0
    %885 = vmatpush1.bf16.msra.mxu0 0
    %886 = vmatprep.subr.bf16.mxu0 0
    %887 = vmatpush1.bf16.msra.mxu0 0
    %888 = vmatprep.subr.bf16.mxu0 0
    %889 = vmatpush1.bf16.msra.mxu0 0
    %890 = vmatprep.subr.bf16.mxu0 0
    %891 = vmatpush1.bf16.msra.mxu0 0
    %892 = vmatprep.subr.bf16.mxu0 0
    %893 = vmatpush1.bf16.msra.mxu0 0
    %894 = vmatprep.subr.bf16.mxu0 0
    %895 = vmatpush1.bf16.msra.mxu0 0
    %896 = vmatprep.subr.bf16.mxu0 0
    %897 = vmatpush1.bf16.msra.mxu0 0
    %898 = vmatprep.subr.bf16.mxu0 0
    %899 = vmatpush1.bf16.msra.mxu0 0
    %900 = vmatprep.subr.bf16.mxu0 0
    %901 = vmatpush1.bf16.msra.mxu0 0
    %902 = vmatprep.subr.bf16.mxu0 0
    %903 = vmatpush1.bf16.msra.mxu0 0
    %904 = vmatprep.mubr.bf16.mxu0 0
    %905 = vmatmul.mubr.bf16.gmra.mrb[0].mxu0 %v870
    %v906 = vpop.f32.mrb[0].mxu0
    %v907 = vadd.f32 %v185, %v906
    %v908 = vpop.f32.mrb[0].mxu0
    %v909 = vpop.f32.mrb[0].mxu0
    %v910 = vpop.f32.mrb[0].mxu0
    %911 = vdwg.mxu0
    %912 = vmatprep.subr.bf16.mxu0 0
    %913 = vmatpush1.bf16.msra.mxu0 %v460
    %914 = vmatprep.subr.bf16.mxu0 0
    %915 = vmatpush1.bf16.msra.mxu0 %v461
    %916 = vmatprep.subr.bf16.mxu0 0
    %917 = vmatpush1.bf16.msra.mxu0 0
    %918 = vmatprep.subr.bf16.mxu0 0
    %919 = vmatpush1.bf16.msra.mxu0 0
    %920 = vmatprep.subr.bf16.mxu0 0
    %921 = vmatpush1.bf16.msra.mxu0 0
    %922 = vmatprep.subr.bf16.mxu0 0
    %923 = vmatpush1.bf16.msra.mxu0 0
    %924 = vmatprep.subr.bf16.mxu0 0
    %925 = vmatpush1.bf16.msra.mxu0 0
    %926 = vmatprep.subr.bf16.mxu0 0
    %927 = vmatpush1.bf16.msra.mxu0 0
    %928 = vmatprep.subr.bf16.mxu0 0
    %929 = vmatpush1.bf16.msra.mxu0 0
    %930 = vmatprep.subr.bf16.mxu0 0
    %931 = vmatpush1.bf16.msra.mxu0 0
    %932 = vmatprep.subr.bf16.mxu0 0
    %933 = vmatpush1.bf16.msra.mxu0 0
    %934 = vmatprep.subr.bf16.mxu0 0
    %935 = vmatpush1.bf16.msra.mxu0 0
    %936 = vmatprep.subr.bf16.mxu0 0
    %937 = vmatpush1.bf16.msra.mxu0 0
    %938 = vmatprep.subr.bf16.mxu0 0
    %939 = vmatpush1.bf16.msra.mxu0 0
    %940 = vmatprep.subr.bf16.mxu0 0
    %941 = vmatpush1.bf16.msra.mxu0 0
    %942 = vmatprep.subr.bf16.mxu0 0
    %943 = vmatpush1.bf16.msra.mxu0 0
    %944 = vmatprep.mubr.bf16.mxu0 0
    %945 = vmatmul.mubr.bf16.gmra.mrb[0].mxu0 %v758
    %v946 = vpop.f32.mrb[0].mxu0
    %v947 = vadd.f32 0.0, %v946
    %v948 = vpop.f32.mrb[0].mxu0
    %v949 = vpop.f32.mrb[0].mxu0
    %v950 = vpop.f32.mrb[0].mxu0
    %951 = vdwg.mxu0
    %v952 = vadd.f32 %v907, %v947
    %v953 = vxor.u32 %v952, 2147483648
    %v954 = vmul.f32 %v953, 1.442695
    %v955 = vpow.pop %v954
    %v956 = vadd.f32 %v955, 1.0
    %v957 = vrcp.pop %v956
    %v958 = vmul.f32 1.0, %v957
    %v959 = vtanh.pop %v952
    %v960 = vmul.f32 %v958, %v746
    %962 = vrot.lane.b32.xlu0 %v959, 64
    %v963 = vpop.permute.xlu0 %962
    %v965 = vmul.f32 %v958, %v963
    %967 = vrot.lane.b32.xlu0 %v965, 32
    %v968 = vpop.permute.xlu0 %967
    %v970 = vadd.f32 %v960, %v968
    %v971 = vtanh.pop %v970
    %973 = vrot.lane.b32.xlu0 %v971, 64
    %v974 = vpop.permute.xlu0 %973
    %v976 = vmul.f32 %v958, %v974
    %v977 = vpack.c.bf16 %v976, %v976
    %979 = vrot.lane.b32.xlu0 %v977, 32
    %v980 = vpop.permute.xlu0 %979
    %v982 = vsel %vm112, %v980, 0
    %984 = vmatprep.subr.bf16.mxu0 0
    %985 = vmatpush1.bf16.msra.mxu0 %v281
    %986 = vmatprep.subr.bf16.mxu0 0
    %987 = vmatpush1.bf16.msra.mxu0 %v282
    %988 = vmatprep.subr.bf16.mxu0 0
    %989 = vmatpush1.bf16.msra.mxu0 0
    %990 = vmatprep.subr.bf16.mxu0 0
    %991 = vmatpush1.bf16.msra.mxu0 0
    %992 = vmatprep.subr.bf16.mxu0 0
    %993 = vmatpush1.bf16.msra.mxu0 0
    %994 = vmatprep.subr.bf16.mxu0 0
    %995 = vmatpush1.bf16.msra.mxu0 0
    %996 = vmatprep.subr.bf16.mxu0 0
    %997 = vmatpush1.bf16.msra.mxu0 0
    %998 = vmatprep.subr.bf16.mxu0 0
    %999 = vmatpush1.bf16.msra.mxu0 0
    %1000 = vmatprep.subr.bf16.mxu0 0
    %1001 = vmatpush1.bf16.msra.mxu0 0
    %1002 = vmatprep.subr.bf16.mxu0 0
    %1003 = vmatpush1.bf16.msra.mxu0 0
    %1004 = vmatprep.subr.bf16.mxu0 0
    %1005 = vmatpush1.bf16.msra.mxu0 0
    %1006 = vmatprep.subr.bf16.mxu0 0
    %1007 = vmatpush1.bf16.msra.mxu0 0
    %1008 = vmatprep.subr.bf16.mxu0 0
    %1009 = vmatpush1.bf16.msra.mxu0 0
    %1010 = vmatprep.subr.bf16.mxu0 0
    %1011 = vmatpush1.bf16.msra.mxu0 0
    %1012 = vmatprep.subr.bf16.mxu0 0
    %1013 = vmatpush1.bf16.msra.mxu0 0
    %1014 = vmatprep.subr.bf16.mxu0 0
    %1015 = vmatpush1.bf16.msra.mxu0 0
    %1016 = vmatprep.mubr.bf16.mxu0 0
    %1017 = vmatmul.mubr.bf16.gmra.mrb[0].mxu0 %v982
    %v1018 = vpop.f32.mrb[0].mxu0
    %v1019 = vadd.f32 0.0, %v1018
    %v1020 = vpop.f32.mrb[0].mxu0
    %v1021 = vpop.f32.mrb[0].mxu0
    %v1022 = vpop.f32.mrb[0].mxu0
    %1023 = vdwg.mxu0
    %1024 = vmatprep.subr.bf16.mxu0 0
    %1025 = vmatpush1.bf16.msra.mxu0 %v336
    %1026 = vmatprep.subr.bf16.mxu0 0
    %1027 = vmatpush1.bf16.msra.mxu0 %v337
    %1028 = vmatprep.subr.bf16.mxu0 0
    %1029 = vmatpush1.bf16.msra.mxu0 0
    %1030 = vmatprep.subr.bf16.mxu0 0
    %1031 = vmatpush1.bf16.msra.mxu0 0
    %1032 = vmatprep.subr.bf16.mxu0 0
    %1033 = vmatpush1.bf16.msra.mxu0 0
    %1034 = vmatprep.subr.bf16.mxu0 0
    %1035 = vmatpush1.bf16.msra.mxu0 0
    %1036 = vmatprep.subr.bf16.mxu0 0
    %1037 = vmatpush1.bf16.msra.mxu0 0
    %1038 = vmatprep.subr.bf16.mxu0 0
    %1039 = vmatpush1.bf16.msra.mxu0 0
    %1040 = vmatprep.subr.bf16.mxu0 0
    %1041 = vmatpush1.bf16.msra.mxu0 0
    %1042 = vmatprep.subr.bf16.mxu0 0
    %1043 = vmatpush1.bf16.msra.mxu0 0
    %1044 = vmatprep.subr.bf16.mxu0 0
    %1045 = vmatpush1.bf16.msra.mxu0 0
    %1046 = vmatprep.subr.bf16.mxu0 0
    %1047 = vmatpush1.bf16.msra.mxu0 0
    %1048 = vmatprep.subr.bf16.mxu0 0
    %1049 = vmatpush1.bf16.msra.mxu0 0
    %1050 = vmatprep.subr.bf16.mxu0 0
    %1051 = vmatpush1.bf16.msra.mxu0 0
    %1052 = vmatprep.subr.bf16.mxu0 0
    %1053 = vmatpush1.bf16.msra.mxu0 0
    %1054 = vmatprep.subr.bf16.mxu0 0
    %1055 = vmatpush1.bf16.msra.mxu0 0
    %1056 = vmatprep.mubr.bf16.mxu0 0
    %1057 = vmatmul.mubr.bf16.gmra.mrb[0].mxu0 %v870
    %v1058 = vpop.f32.mrb[0].mxu0
    %v1059 = vadd.f32 0.0, %v1058
    %v1060 = vpop.f32.mrb[0].mxu0
    %v1061 = vpop.f32.mrb[0].mxu0
    %v1062 = vpop.f32.mrb[0].mxu0
    %1063 = vdwg.mxu0
    %v1064 = vadd.f32 %v151, %v1059
    %v1065 = vxor.u32 %v1064, 2147483648
    %v1066 = vmul.f32 %v1065, 1.442695
    %v1067 = vpow.pop %v1066
    %v1068 = vadd.f32 %v1067, 1.0
    %v1069 = vrcp.pop %v1068
    %v1070 = vmul.f32 1.0, %v1069
    %v1071 = vtanh.pop %v1064
    %v1072 = vmul.f32 %v1070, %v858
    %1074 = vrot.lane.b32.xlu0 %v1071, 64
    %v1075 = vpop.permute.xlu0 %1074
    %v1077 = vmul.f32 %v1070, %v1075
    %1079 = vrot.lane.b32.xlu0 %v1077, 32
    %v1080 = vpop.permute.xlu0 %1079
    %v1082 = vadd.f32 %v1072, %v1080
    %v1083 = vtanh.pop %v1082
    %1085 = vrot.lane.b32.xlu0 %v1083, 64
    %v1086 = vpop.permute.xlu0 %1085
    %v1088 = vmul.f32 %v1070, %v1086
    %v1089 = vpack.c.bf16 %v1088, %v1088
    %1091 = vrot.lane.b32.xlu0 %v1089, 32
    %v1092 = vpop.permute.xlu0 %1091
    %v1094 = vsel %vm112, %v1092, 0
    %1096 = vmatprep.subr.bf16.mxu0 0
    %1097 = vmatpush1.bf16.msra.mxu0 %v198
    %1098 = vmatprep.subr.bf16.mxu0 0
    %1099 = vmatpush1.bf16.msra.mxu0 %v199
    %1100 = vmatprep.subr.bf16.mxu0 0
    %1101 = vmatpush1.bf16.msra.mxu0 0
    %1102 = vmatprep.subr.bf16.mxu0 0
    %1103 = vmatpush1.bf16.msra.mxu0 0
    %1104 = vmatprep.subr.bf16.mxu0 0
    %1105 = vmatpush1.bf16.msra.mxu0 0
    %1106 = vmatprep.subr.bf16.mxu0 0
    %1107 = vmatpush1.bf16.msra.mxu0 0
    %1108 = vmatprep.subr.bf16.mxu0 0
    %1109 = vmatpush1.bf16.msra.mxu0 0
    %1110 = vmatprep.subr.bf16.mxu0 0
    %1111 = vmatpush1.bf16.msra.mxu0 0
    %1112 = vmatprep.subr.bf16.mxu0 0
    %1113 = vmatpush1.bf16.msra.mxu0 0
    %1114 = vmatprep.subr.bf16.mxu0 0
    %1115 = vmatpush1.bf16.msra.mxu0 0
    %1116 = vmatprep.subr.bf16.mxu0 0
    %1117 = vmatpush1.bf16.msra.mxu0 0
    %1118 = vmatprep.subr.bf16.mxu0 0
    %1119 = vmatpush1.bf16.msra.mxu0 0
    %1120 = vmatprep.subr.bf16.mxu0 0
    %1121 = vmatpush1.bf16.msra.mxu0 0
    %1122 = vmatprep.subr.bf16.mxu0 0
    %1123 = vmatpush1.bf16.msra.mxu0 0
    %1124 = vmatprep.subr.bf16.mxu0 0
    %1125 = vmatpush1.bf16.msra.mxu0 0
    %1126 = vmatprep.subr.bf16.mxu0 0
    %1127 = vmatpush1.bf16.msra.mxu0 0
    %1128 = vmatprep.mubr.bf16.mxu0 0
    %1129 = vmatmul.mubr.bf16.gmra.mrb[0].mxu0 %v1094
    %v1130 = vpop.f32.mrb[0].mxu0
    %v1131 = vadd.f32 %v185, %v1130
    %v1132 = vpop.f32.mrb[0].mxu0
    %v1133 = vpop.f32.mrb[0].mxu0
    %v1134 = vpop.f32.mrb[0].mxu0
    %1135 = vdwg.mxu0
    %1136 = vmatprep.subr.bf16.mxu0 0
    %1137 = vmatpush1.bf16.msra.mxu0 %v460
    %1138 = vmatprep.subr.bf16.mxu0 0
    %1139 = vmatpush1.bf16.msra.mxu0 %v461
    %1140 = vmatprep.subr.bf16.mxu0 0
    %1141 = vmatpush1.bf16.msra.mxu0 0
    %1142 = vmatprep.subr.bf16.mxu0 0
    %1143 = vmatpush1.bf16.msra.mxu0 0
    %1144 = vmatprep.subr.bf16.mxu0 0
    %1145 = vmatpush1.bf16.msra.mxu0 0
    %1146 = vmatprep.subr.bf16.mxu0 0
    %1147 = vmatpush1.bf16.msra.mxu0 0
    %1148 = vmatprep.subr.bf16.mxu0 0
    %1149 = vmatpush1.bf16.msra.mxu0 0
    %1150 = vmatprep.subr.bf16.mxu0 0
    %1151 = vmatpush1.bf16.msra.mxu0 0
    %1152 = vmatprep.subr.bf16.mxu0 0
    %1153 = vmatpush1.bf16.msra.mxu0 0
    %1154 = vmatprep.subr.bf16.mxu0 0
    %1155 = vmatpush1.bf16.msra.mxu0 0
    %1156 = vmatprep.subr.bf16.mxu0 0
    %1157 = vmatpush1.bf16.msra.mxu0 0
    %1158 = vmatprep.subr.bf16.mxu0 0
    %1159 = vmatpush1.bf16.msra.mxu0 0
    %1160 = vmatprep.subr.bf16.mxu0 0
    %1161 = vmatpush1.bf16.msra.mxu0 0
    %1162 = vmatprep.subr.bf16.mxu0 0
    %1163 = vmatpush1.bf16.msra.mxu0 0
    %1164 = vmatprep.subr.bf16.mxu0 0
    %1165 = vmatpush1.bf16.msra.mxu0 0
    %1166 = vmatprep.subr.bf16.mxu0 0
    %1167 = vmatpush1.bf16.msra.mxu0 0
    %1168 = vmatprep.mubr.bf16.mxu0 0
    %1169 = vmatmul.mubr.bf16.gmra.mrb[0].mxu0 %v982
    %v1170 = vpop.f32.mrb[0].mxu0
    %v1171 = vadd.f32 0.0, %v1170
    %v1172 = vpop.f32.mrb[0].mxu0
    %v1173 = vpop.f32.mrb[0].mxu0
    %v1174 = vpop.f32.mrb[0].mxu0
    %1175 = vdwg.mxu0
    %v1176 = vadd.f32 %v1131, %v1171
    %v1177 = vxor.u32 %v1176, 2147483648
    %v1178 = vmul.f32 %v1177, 1.442695
    %v1179 = vpow.pop %v1178
    %v1180 = vadd.f32 %v1179, 1.0
    %v1181 = vrcp.pop %v1180
    %v1182 = vmul.f32 1.0, %v1181
    %v1183 = vtanh.pop %v1176
    %v1184 = vmul.f32 %v1182, %v970
    %1186 = vrot.lane.b32.xlu0 %v1183, 64
    %v1187 = vpop.permute.xlu0 %1186
    %v1189 = vmul.f32 %v1182, %v1187
    %1191 = vrot.lane.b32.xlu0 %v1189, 32
    %v1192 = vpop.permute.xlu0 %1191
    %v1194 = vadd.f32 %v1184, %v1192
    %v1195 = vtanh.pop %v1194
    %1197 = vrot.lane.b32.xlu0 %v1195, 64
    %v1198 = vpop.permute.xlu0 %1197
    %v1200 = vmul.f32 %v1182, %v1198
    %v1201 = vpack.c.bf16 %v1200, %v1200
    %1203 = vrot.lane.b32.xlu0 %v1201, 32
    %v1204 = vpop.permute.xlu0 %1203
    %v1206 = vsel %vm112, %v1204, 0
    %1208 = vmatprep.subr.bf16.mxu0 0
    %1209 = vmatpush1.bf16.msra.mxu0 %v281
    %1210 = vmatprep.subr.bf16.mxu0 0
    %1211 = vmatpush1.bf16.msra.mxu0 %v282
    %1212 = vmatprep.subr.bf16.mxu0 0
    %1213 = vmatpush1.bf16.msra.mxu0 0
    %1214 = vmatprep.subr.bf16.mxu0 0
    %1215 = vmatpush1.bf16.msra.mxu0 0
    %1216 = vmatprep.subr.bf16.mxu0 0
    %1217 = vmatpush1.bf16.msra.mxu0 0
    %1218 = vmatprep.subr.bf16.mxu0 0
    %1219 = vmatpush1.bf16.msra.mxu0 0
    %1220 = vmatprep.subr.bf16.mxu0 0
    %1221 = vmatpush1.bf16.msra.mxu0 0
    %1222 = vmatprep.subr.bf16.mxu0 0
    %1223 = vmatpush1.bf16.msra.mxu0 0
    %1224 = vmatprep.subr.bf16.mxu0 0
    %1225 = vmatpush1.bf16.msra.mxu0 0
    %1226 = vmatprep.subr.bf16.mxu0 0
    %1227 = vmatpush1.bf16.msra.mxu0 0
    %1228 = vmatprep.subr.bf16.mxu0 0
    %1229 = vmatpush1.bf16.msra.mxu0 0
    %1230 = vmatprep.subr.bf16.mxu0 0
    %1231 = vmatpush1.bf16.msra.mxu0 0
    %1232 = vmatprep.subr.bf16.mxu0 0
    %1233 = vmatpush1.bf16.msra.mxu0 0
    %1234 = vmatprep.subr.bf16.mxu0 0
    %1235 = vmatpush1.bf16.msra.mxu0 0
    %1236 = vmatprep.subr.bf16.mxu0 0
    %1237 = vmatpush1.bf16.msra.mxu0 0
    %1238 = vmatprep.subr.bf16.mxu0 0
    %1239 = vmatpush1.bf16.msra.mxu0 0
    %1240 = vmatprep.mubr.bf16.mxu0 0
    %1241 = vmatmul.mubr.bf16.gmra.mrb[0].mxu0 %v1206
    %v1242 = vpop.f32.mrb[0].mxu0
    %v1243 = vadd.f32 0.0, %v1242
    %v1244 = vpop.f32.mrb[0].mxu0
    %v1245 = vpop.f32.mrb[0].mxu0
    %v1246 = vpop.f32.mrb[0].mxu0
    %1247 = vdwg.mxu0
    %1248 = vmatprep.subr.bf16.mxu0 0
    %1249 = vmatpush1.bf16.msra.mxu0 %v336
    %1250 = vmatprep.subr.bf16.mxu0 0
    %1251 = vmatpush1.bf16.msra.mxu0 %v337
    %1252 = vmatprep.subr.bf16.mxu0 0
    %1253 = vmatpush1.bf16.msra.mxu0 0
    %1254 = vmatprep.subr.bf16.mxu0 0
    %1255 = vmatpush1.bf16.msra.mxu0 0
    %1256 = vmatprep.subr.bf16.mxu0 0
    %1257 = vmatpush1.bf16.msra.mxu0 0
    %1258 = vmatprep.subr.bf16.mxu0 0
    %1259 = vmatpush1.bf16.msra.mxu0 0
    %1260 = vmatprep.subr.bf16.mxu0 0
    %1261 = vmatpush1.bf16.msra.mxu0 0
    %1262 = vmatprep.subr.bf16.mxu0 0
    %1263 = vmatpush1.bf16.msra.mxu0 0
    %1264 = vmatprep.subr.bf16.mxu0 0
    %1265 = vmatpush1.bf16.msra.mxu0 0
    %1266 = vmatprep.subr.bf16.mxu0 0
    %1267 = vmatpush1.bf16.msra.mxu0 0
    %1268 = vmatprep.subr.bf16.mxu0 0
    %1269 = vmatpush1.bf16.msra.mxu0 0
    %1270 = vmatprep.subr.bf16.mxu0 0
    %1271 = vmatpush1.bf16.msra.mxu0 0
    %1272 = vmatprep.subr.bf16.mxu0 0
    %1273 = vmatpush1.bf16.msra.mxu0 0
    %1274 = vmatprep.subr.bf16.mxu0 0
    %1275 = vmatpush1.bf16.msra.mxu0 0
    %1276 = vmatprep.subr.bf16.mxu0 0
    %1277 = vmatpush1.bf16.msra.mxu0 0
    %1278 = vmatprep.subr.bf16.mxu0 0
    %1279 = vmatpush1.bf16.msra.mxu0 0
    %1280 = vmatprep.mubr.bf16.mxu0 0
    %1281 = vmatmul.mubr.bf16.gmra.mrb[0].mxu0 %v1094
    %v1282 = vpop.f32.mrb[0].mxu0
    %v1283 = vadd.f32 0.0, %v1282
    %v1284 = vpop.f32.mrb[0].mxu0
    %v1285 = vpop.f32.mrb[0].mxu0
    %v1286 = vpop.f32.mrb[0].mxu0
    %1287 = vdwg.mxu0
    %v1288 = vadd.f32 %v151, %v1283
    %v1289 = vxor.u32 %v1288, 2147483648
    %v1290 = vmul.f32 %v1289, 1.442695
    %v1291 = vpow.pop %v1290
    %v1292 = vadd.f32 %v1291, 1.0
    %v1293 = vrcp.pop %v1292
    %v1294 = vmul.f32 1.0, %v1293
    %v1295 = vtanh.pop %v1288
    %v1296 = vmul.f32 %v1294, %v1082
    %1298 = vrot.lane.b32.xlu0 %v1295, 64
    %v1299 = vpop.permute.xlu0 %1298
    %v1301 = vmul.f32 %v1294, %v1299
    %1303 = vrot.lane.b32.xlu0 %v1301, 32
    %v1304 = vpop.permute.xlu0 %1303
    %v1306 = vadd.f32 %v1296, %v1304
    %v1307 = vtanh.pop %v1306
    %1309 = vrot.lane.b32.xlu0 %v1307, 64
    %v1310 = vpop.permute.xlu0 %1309
    %v1312 = vmul.f32 %v1294, %v1310
    %v1313 = vpack.c.bf16 %v1312, %v1312
    %1315 = vrot.lane.b32.xlu0 %v1313, 32
    %v1316 = vpop.permute.xlu0 %1315
    %v1318 = vsel %vm112, %v1316, 0
    %1320 = vmatprep.subr.bf16.mxu0 0
    %1321 = vmatpush1.bf16.msra.mxu0 %v198
    %1322 = vmatprep.subr.bf16.mxu0 0
    %1323 = vmatpush1.bf16.msra.mxu0 %v199
    %1324 = vmatprep.subr.bf16.mxu0 0
    %1325 = vmatpush1.bf16.msra.mxu0 0
    %1326 = vmatprep.subr.bf16.mxu0 0
    %1327 = vmatpush1.bf16.msra.mxu0 0
    %1328 = vmatprep.subr.bf16.mxu0 0
    %1329 = vmatpush1.bf16.msra.mxu0 0
    %1330 = vmatprep.subr.bf16.mxu0 0
    %1331 = vmatpush1.bf16.msra.mxu0 0
    %1332 = vmatprep.subr.bf16.mxu0 0
    %1333 = vmatpush1.bf16.msra.mxu0 0
    %1334 = vmatprep.subr.bf16.mxu0 0
    %1335 = vmatpush1.bf16.msra.mxu0 0
    %1336 = vmatprep.subr.bf16.mxu0 0
    %1337 = vmatpush1.bf16.msra.mxu0 0
    %1338 = vmatprep.subr.bf16.mxu0 0
    %1339 = vmatpush1.bf16.msra.mxu0 0
    %1340 = vmatprep.subr.bf16.mxu0 0
    %1341 = vmatpush1.bf16.msra.mxu0 0
    %1342 = vmatprep.subr.bf16.mxu0 0
    %1343 = vmatpush1.bf16.msra.mxu0 0
    %1344 = vmatprep.subr.bf16.mxu0 0
    %1345 = vmatpush1.bf16.msra.mxu0 0
    %1346 = vmatprep.subr.bf16.mxu0 0
    %1347 = vmatpush1.bf16.msra.mxu0 0
    %1348 = vmatprep.subr.bf16.mxu0 0
    %1349 = vmatpush1.bf16.msra.mxu0 0
    %1350 = vmatprep.subr.bf16.mxu0 0
    %1351 = vmatpush1.bf16.msra.mxu0 0
    %1352 = vmatprep.mubr.bf16.mxu0 0
    %1353 = vmatmul.mubr.bf16.gmra.mrb[0].mxu0 %v1318
    %v1354 = vpop.f32.mrb[0].mxu0
    %v1355 = vadd.f32 %v185, %v1354
    %v1356 = vpop.f32.mrb[0].mxu0
    %v1357 = vpop.f32.mrb[0].mxu0
    %v1358 = vpop.f32.mrb[0].mxu0
    %1359 = vdwg.mxu0
    %1360 = vmatprep.subr.bf16.mxu0 0
    %1361 = vmatpush1.bf16.msra.mxu0 %v460
    %1362 = vmatprep.subr.bf16.mxu0 0
    %1363 = vmatpush1.bf16.msra.mxu0 %v461
    %1364 = vmatprep.subr.bf16.mxu0 0
    %1365 = vmatpush1.bf16.msra.mxu0 0
    %1366 = vmatprep.subr.bf16.mxu0 0
    %1367 = vmatpush1.bf16.msra.mxu0 0
    %1368 = vmatprep.subr.bf16.mxu0 0
    %1369 = vmatpush1.bf16.msra.mxu0 0
    %1370 = vmatprep.subr.bf16.mxu0 0
    %1371 = vmatpush1.bf16.msra.mxu0 0
    %1372 = vmatprep.subr.bf16.mxu0 0
    %1373 = vmatpush1.bf16.msra.mxu0 0
    %1374 = vmatprep.subr.bf16.mxu0 0
    %1375 = vmatpush1.bf16.msra.mxu0 0
    %1376 = vmatprep.subr.bf16.mxu0 0
    %1377 = vmatpush1.bf16.msra.mxu0 0
    %1378 = vmatprep.subr.bf16.mxu0 0
    %1379 = vmatpush1.bf16.msra.mxu0 0
    %1380 = vmatprep.subr.bf16.mxu0 0
    %1381 = vmatpush1.bf16.msra.mxu0 0
    %1382 = vmatprep.subr.bf16.mxu0 0
    %1383 = vmatpush1.bf16.msra.mxu0 0
    %1384 = vmatprep.subr.bf16.mxu0 0
    %1385 = vmatpush1.bf16.msra.mxu0 0
    %1386 = vmatprep.subr.bf16.mxu0 0
    %1387 = vmatpush1.bf16.msra.mxu0 0
    %1388 = vmatprep.subr.bf16.mxu0 0
    %1389 = vmatpush1.bf16.msra.mxu0 0
    %1390 = vmatprep.subr.bf16.mxu0 0
    %1391 = vmatpush1.bf16.msra.mxu0 0
    %1392 = vmatprep.mubr.bf16.mxu0 0
    %1393 = vmatmul.mubr.bf16.gmra.mrb[0].mxu0 %v1206
    %v1394 = vpop.f32.mrb[0].mxu0
    %v1395 = vadd.f32 0.0, %v1394
    %v1396 = vpop.f32.mrb[0].mxu0
    %v1397 = vpop.f32.mrb[0].mxu0
    %v1398 = vpop.f32.mrb[0].mxu0
    %1399 = vdwg.mxu0
    %v1400 = vadd.f32 %v1355, %v1395
    %v1401 = vxor.u32 %v1400, 2147483648
    %v1402 = vmul.f32 %v1401, 1.442695
    %v1403 = vpow.pop %v1402
    %v1404 = vadd.f32 %v1403, 1.0
    %v1405 = vrcp.pop %v1404
    %v1406 = vmul.f32 1.0, %v1405
    %v1407 = vtanh.pop %v1400
    %v1408 = vmul.f32 %v1406, %v1194
    %1410 = vrot.lane.b32.xlu0 %v1407, 64
    %v1411 = vpop.permute.xlu0 %1410
    %v1413 = vmul.f32 %v1406, %v1411
    %1415 = vrot.lane.b32.xlu0 %v1413, 32
    %v1416 = vpop.permute.xlu0 %1415
    %v1418 = vadd.f32 %v1408, %v1416
    %v1419 = vtanh.pop %v1418
    %1421 = vrot.lane.b32.xlu0 %v1419, 64
    %v1422 = vpop.permute.xlu0 %1421
    %v1424 = vmul.f32 %v1406, %v1422
    %v1425 = vpack.c.bf16 %v1424, %v1424
    %1427 = vrot.lane.b32.xlu0 %v1425, 32
    %v1428 = vpop.permute.xlu0 %1427
    %v1430 = vsel %vm112, %v1428, 0
    %1432 = vmatprep.subr.bf16.mxu0 0
    %1433 = vmatpush1.bf16.msra.mxu0 %v281
    %1434 = vmatprep.subr.bf16.mxu0 0
    %1435 = vmatpush1.bf16.msra.mxu0 %v282
    %1436 = vmatprep.subr.bf16.mxu0 0
    %1437 = vmatpush1.bf16.msra.mxu0 0
    %1438 = vmatprep.subr.bf16.mxu0 0
    %1439 = vmatpush1.bf16.msra.mxu0 0
    %1440 = vmatprep.subr.bf16.mxu0 0
    %1441 = vmatpush1.bf16.msra.mxu0 0
    %1442 = vmatprep.subr.bf16.mxu0 0
    %1443 = vmatpush1.bf16.msra.mxu0 0
    %1444 = vmatprep.subr.bf16.mxu0 0
    %1445 = vmatpush1.bf16.msra.mxu0 0
    %1446 = vmatprep.subr.bf16.mxu0 0
    %1447 = vmatpush1.bf16.msra.mxu0 0
    %1448 = vmatprep.subr.bf16.mxu0 0
    %1449 = vmatpush1.bf16.msra.mxu0 0
    %1450 = vmatprep.subr.bf16.mxu0 0
    %1451 = vmatpush1.bf16.msra.mxu0 0
    %1452 = vmatprep.subr.bf16.mxu0 0
    %1453 = vmatpush1.bf16.msra.mxu0 0
    %1454 = vmatprep.subr.bf16.mxu0 0
    %1455 = vmatpush1.bf16.msra.mxu0 0
    %1456 = vmatprep.subr.bf16.mxu0 0
    %1457 = vmatpush1.bf16.msra.mxu0 0
    %1458 = vmatprep.subr.bf16.mxu0 0
    %1459 = vmatpush1.bf16.msra.mxu0 0
    %1460 = vmatprep.subr.bf16.mxu0 0
    %1461 = vmatpush1.bf16.msra.mxu0 0
    %1462 = vmatprep.subr.bf16.mxu0 0
    %1463 = vmatpush1.bf16.msra.mxu0 0
    %1464 = vmatprep.mubr.bf16.mxu0 0
    %1465 = vmatmul.mubr.bf16.gmra.mrb[0].mxu0 %v1430
    %v1466 = vpop.f32.mrb[0].mxu0
    %v1467 = vadd.f32 0.0, %v1466
    %v1468 = vpop.f32.mrb[0].mxu0
    %v1469 = vpop.f32.mrb[0].mxu0
    %v1470 = vpop.f32.mrb[0].mxu0
    %1471 = vdwg.mxu0
    %1472 = vmatprep.subr.bf16.mxu0 0
    %1473 = vmatpush1.bf16.msra.mxu0 %v336
    %1474 = vmatprep.subr.bf16.mxu0 0
    %1475 = vmatpush1.bf16.msra.mxu0 %v337
    %1476 = vmatprep.subr.bf16.mxu0 0
    %1477 = vmatpush1.bf16.msra.mxu0 0
    %1478 = vmatprep.subr.bf16.mxu0 0
    %1479 = vmatpush1.bf16.msra.mxu0 0
    %1480 = vmatprep.subr.bf16.mxu0 0
    %1481 = vmatpush1.bf16.msra.mxu0 0
    %1482 = vmatprep.subr.bf16.mxu0 0
    %1483 = vmatpush1.bf16.msra.mxu0 0
    %1484 = vmatprep.subr.bf16.mxu0 0
    %1485 = vmatpush1.bf16.msra.mxu0 0
    %1486 = vmatprep.subr.bf16.mxu0 0
    %1487 = vmatpush1.bf16.msra.mxu0 0
    %1488 = vmatprep.subr.bf16.mxu0 0
    %1489 = vmatpush1.bf16.msra.mxu0 0
    %1490 = vmatprep.subr.bf16.mxu0 0
    %1491 = vmatpush1.bf16.msra.mxu0 0
    %1492 = vmatprep.subr.bf16.mxu0 0
    %1493 = vmatpush1.bf16.msra.mxu0 0
    %1494 = vmatprep.subr.bf16.mxu0 0
    %1495 = vmatpush1.bf16.msra.mxu0 0
    %1496 = vmatprep.subr.bf16.mxu0 0
    %1497 = vmatpush1.bf16.msra.mxu0 0
    %1498 = vmatprep.subr.bf16.mxu0 0
    %1499 = vmatpush1.bf16.msra.mxu0 0
    %1500 = vmatprep.subr.bf16.mxu0 0
    %1501 = vmatpush1.bf16.msra.mxu0 0
    %1502 = vmatprep.subr.bf16.mxu0 0
    %1503 = vmatpush1.bf16.msra.mxu0 0
    %1504 = vmatprep.mubr.bf16.mxu0 0
    %1505 = vmatmul.mubr.bf16.gmra.mrb[0].mxu0 %v1318
    %v1506 = vpop.f32.mrb[0].mxu0
    %v1507 = vadd.f32 0.0, %v1506
    %v1508 = vpop.f32.mrb[0].mxu0
    %v1509 = vpop.f32.mrb[0].mxu0
    %v1510 = vpop.f32.mrb[0].mxu0
    %1511 = vdwg.mxu0
    %v1512 = vadd.f32 %v151, %v1507
    %v1513 = vxor.u32 %v1512, 2147483648
    %v1514 = vmul.f32 %v1513, 1.442695
    %v1515 = vpow.pop %v1514
    %v1516 = vadd.f32 %v1515, 1.0
    %v1517 = vrcp.pop %v1516
    %v1518 = vmul.f32 1.0, %v1517
    %v1519 = vtanh.pop %v1512
    %v1520 = vmul.f32 %v1518, %v1306
    %1522 = vrot.lane.b32.xlu0 %v1519, 64
    %v1523 = vpop.permute.xlu0 %1522
    %v1525 = vmul.f32 %v1518, %v1523
    %1527 = vrot.lane.b32.xlu0 %v1525, 32
    %v1528 = vpop.permute.xlu0 %1527
    %v1530 = vadd.f32 %v1520, %v1528
    %v1531 = vtanh.pop %v1530
    %1533 = vrot.lane.b32.xlu0 %v1531, 64
    %v1534 = vpop.permute.xlu0 %1533
    %v1536 = vmul.f32 %v1518, %v1534
    %v1537 = vpack.c.bf16 %v1536, %v1536
    %1539 = vrot.lane.b32.xlu0 %v1537, 32
    %v1540 = vpop.permute.xlu0 %1539
    %v1542 = vsel %vm112, %v1540, 0
    %1544 = vmatprep.subr.bf16.mxu0 0
    %1545 = vmatpush1.bf16.msra.mxu0 %v198
    %1546 = vmatprep.subr.bf16.mxu0 0
    %1547 = vmatpush1.bf16.msra.mxu0 %v199
    %1548 = vmatprep.subr.bf16.mxu0 0
    %1549 = vmatpush1.bf16.msra.mxu0 0
    %1550 = vmatprep.subr.bf16.mxu0 0
    %1551 = vmatpush1.bf16.msra.mxu0 0
    %1552 = vmatprep.subr.bf16.mxu0 0
    %1553 = vmatpush1.bf16.msra.mxu0 0
    %1554 = vmatprep.subr.bf16.mxu0 0
    %1555 = vmatpush1.bf16.msra.mxu0 0
    %1556 = vmatprep.subr.bf16.mxu0 0
    %1557 = vmatpush1.bf16.msra.mxu0 0
    %1558 = vmatprep.subr.bf16.mxu0 0
    %1559 = vmatpush1.bf16.msra.mxu0 0
    %1560 = vmatprep.subr.bf16.mxu0 0
    %1561 = vmatpush1.bf16.msra.mxu0 0
    %1562 = vmatprep.subr.bf16.mxu0 0
    %1563 = vmatpush1.bf16.msra.mxu0 0
    %1564 = vmatprep.subr.bf16.mxu0 0
    %1565 = vmatpush1.bf16.msra.mxu0 0
    %1566 = vmatprep.subr.bf16.mxu0 0
    %1567 = vmatpush1.bf16.msra.mxu0 0
    %1568 = vmatprep.subr.bf16.mxu0 0
    %1569 = vmatpush1.bf16.msra.mxu0 0
    %1570 = vmatprep.subr.bf16.mxu0 0
    %1571 = vmatpush1.bf16.msra.mxu0 0
    %1572 = vmatprep.subr.bf16.mxu0 0
    %1573 = vmatpush1.bf16.msra.mxu0 0
    %1574 = vmatprep.subr.bf16.mxu0 0
    %1575 = vmatpush1.bf16.msra.mxu0 0
    %1576 = vmatprep.mubr.bf16.mxu0 0
    %1577 = vmatmul.mubr.bf16.gmra.mrb[0].mxu0 %v1542
    %v1578 = vpop.f32.mrb[0].mxu0
    %v1579 = vadd.f32 %v185, %v1578
    %v1580 = vpop.f32.mrb[0].mxu0
    %v1581 = vpop.f32.mrb[0].mxu0
    %v1582 = vpop.f32.mrb[0].mxu0
    %1583 = vdwg.mxu0
    %1584 = vmatprep.subr.bf16.mxu0 0
    %1585 = vmatpush1.bf16.msra.mxu0 %v460
    %1586 = vmatprep.subr.bf16.mxu0 0
    %1587 = vmatpush1.bf16.msra.mxu0 %v461
    %1588 = vmatprep.subr.bf16.mxu0 0
    %1589 = vmatpush1.bf16.msra.mxu0 0
    %1590 = vmatprep.subr.bf16.mxu0 0
    %1591 = vmatpush1.bf16.msra.mxu0 0
    %1592 = vmatprep.subr.bf16.mxu0 0
    %1593 = vmatpush1.bf16.msra.mxu0 0
    %1594 = vmatprep.subr.bf16.mxu0 0
    %1595 = vmatpush1.bf16.msra.mxu0 0
    %1596 = vmatprep.subr.bf16.mxu0 0
    %1597 = vmatpush1.bf16.msra.mxu0 0
    %1598 = vmatprep.subr.bf16.mxu0 0
    %1599 = vmatpush1.bf16.msra.mxu0 0
    %1600 = vmatprep.subr.bf16.mxu0 0
    %1601 = vmatpush1.bf16.msra.mxu0 0
    %1602 = vmatprep.subr.bf16.mxu0 0
    %1603 = vmatpush1.bf16.msra.mxu0 0
    %1604 = vmatprep.subr.bf16.mxu0 0
    %1605 = vmatpush1.bf16.msra.mxu0 0
    %1606 = vmatprep.subr.bf16.mxu0 0
    %1607 = vmatpush1.bf16.msra.mxu0 0
    %1608 = vmatprep.subr.bf16.mxu0 0
    %1609 = vmatpush1.bf16.msra.mxu0 0
    %1610 = vmatprep.subr.bf16.mxu0 0
    %1611 = vmatpush1.bf16.msra.mxu0 0
    %1612 = vmatprep.subr.bf16.mxu0 0
    %1613 = vmatpush1.bf16.msra.mxu0 0
    %1614 = vmatprep.subr.bf16.mxu0 0
    %1615 = vmatpush1.bf16.msra.mxu0 0
    %1616 = vmatprep.mubr.bf16.mxu0 0
    %1617 = vmatmul.mubr.bf16.gmra.mrb[0].mxu0 %v1430
    %v1618 = vpop.f32.mrb[0].mxu0
    %v1619 = vadd.f32 0.0, %v1618
    %v1620 = vpop.f32.mrb[0].mxu0
    %v1621 = vpop.f32.mrb[0].mxu0
    %v1622 = vpop.f32.mrb[0].mxu0
    %1623 = vdwg.mxu0
    %v1624 = vadd.f32 %v1579, %v1619
    %v1625 = vxor.u32 %v1624, 2147483648
    %v1626 = vmul.f32 %v1625, 1.442695
    %v1627 = vpow.pop %v1626
    %v1628 = vadd.f32 %v1627, 1.0
    %v1629 = vrcp.pop %v1628
    %v1630 = vmul.f32 1.0, %v1629
    %v1631 = vtanh.pop %v1624
    %v1632 = vmul.f32 %v1630, %v1418
    %1634 = vrot.lane.b32.xlu0 %v1631, 64
    %v1635 = vpop.permute.xlu0 %1634
    %v1637 = vmul.f32 %v1630, %v1635
    %1639 = vrot.lane.b32.xlu0 %v1637, 32
    %v1640 = vpop.permute.xlu0 %1639
    %v1642 = vadd.f32 %v1632, %v1640
    %v1643 = vtanh.pop %v1642
    %1645 = vrot.lane.b32.xlu0 %v1643, 64
    %v1646 = vpop.permute.xlu0 %1645
    %v1648 = vmul.f32 %v1630, %v1646
    %v1649 = vpack.c.bf16 %v1648, %v1648
    %1651 = vrot.lane.b32.xlu0 %v1649, 32
    %v1652 = vpop.permute.xlu0 %1651
    %v1654 = vsel %vm112, %v1652, 0
    %1656 = vmatprep.subr.bf16.mxu0 0
    %1657 = vmatpush1.bf16.msra.mxu0 %v281
    %1658 = vmatprep.subr.bf16.mxu0 0
    %1659 = vmatpush1.bf16.msra.mxu0 %v282
    %1660 = vmatprep.subr.bf16.mxu0 0
    %1661 = vmatpush1.bf16.msra.mxu0 0
    %1662 = vmatprep.subr.bf16.mxu0 0
    %1663 = vmatpush1.bf16.msra.mxu0 0
    %1664 = vmatprep.subr.bf16.mxu0 0
    %1665 = vmatpush1.bf16.msra.mxu0 0
    %1666 = vmatprep.subr.bf16.mxu0 0
    %1667 = vmatpush1.bf16.msra.mxu0 0
    %1668 = vmatprep.subr.bf16.mxu0 0
    %1669 = vmatpush1.bf16.msra.mxu0 0
    %1670 = vmatprep.subr.bf16.mxu0 0
    %1671 = vmatpush1.bf16.msra.mxu0 0
    %1672 = vmatprep.subr.bf16.mxu0 0
    %1673 = vmatpush1.bf16.msra.mxu0 0
    %1674 = vmatprep.subr.bf16.mxu0 0
    %1675 = vmatpush1.bf16.msra.mxu0 0
    %1676 = vmatprep.subr.bf16.mxu0 0
    %1677 = vmatpush1.bf16.msra.mxu0 0
    %1678 = vmatprep.subr.bf16.mxu0 0
    %1679 = vmatpush1.bf16.msra.mxu0 0
    %1680 = vmatprep.subr.bf16.mxu0 0
    %1681 = vmatpush1.bf16.msra.mxu0 0
    %1682 = vmatprep.subr.bf16.mxu0 0
    %1683 = vmatpush1.bf16.msra.mxu0 0
    %1684 = vmatprep.subr.bf16.mxu0 0
    %1685 = vmatpush1.bf16.msra.mxu0 0
    %1686 = vmatprep.subr.bf16.mxu0 0
    %1687 = vmatpush1.bf16.msra.mxu0 0
    %1688 = vmatprep.mubr.bf16.mxu0 0
    %1689 = vmatmul.mubr.bf16.gmra.mrb[0].mxu0 %v1654
    %v1690 = vpop.f32.mrb[0].mxu0
    %v1691 = vadd.f32 0.0, %v1690
    %v1692 = vpop.f32.mrb[0].mxu0
    %v1693 = vpop.f32.mrb[0].mxu0
    %v1694 = vpop.f32.mrb[0].mxu0
    %1695 = vdwg.mxu0
    %1696 = vmatprep.subr.bf16.mxu0 0
    %1697 = vmatpush1.bf16.msra.mxu0 %v336
    %1698 = vmatprep.subr.bf16.mxu0 0
    %1699 = vmatpush1.bf16.msra.mxu0 %v337
    %1700 = vmatprep.subr.bf16.mxu0 0
    %1701 = vmatpush1.bf16.msra.mxu0 0
    %1702 = vmatprep.subr.bf16.mxu0 0
    %1703 = vmatpush1.bf16.msra.mxu0 0
    %1704 = vmatprep.subr.bf16.mxu0 0
    %1705 = vmatpush1.bf16.msra.mxu0 0
    %1706 = vmatprep.subr.bf16.mxu0 0
    %1707 = vmatpush1.bf16.msra.mxu0 0
    %1708 = vmatprep.subr.bf16.mxu0 0
    %1709 = vmatpush1.bf16.msra.mxu0 0
    %1710 = vmatprep.subr.bf16.mxu0 0
    %1711 = vmatpush1.bf16.msra.mxu0 0
    %1712 = vmatprep.subr.bf16.mxu0 0
    %1713 = vmatpush1.bf16.msra.mxu0 0
    %1714 = vmatprep.subr.bf16.mxu0 0
    %1715 = vmatpush1.bf16.msra.mxu0 0
    %1716 = vmatprep.subr.bf16.mxu0 0
    %1717 = vmatpush1.bf16.msra.mxu0 0
    %1718 = vmatprep.subr.bf16.mxu0 0
    %1719 = vmatpush1.bf16.msra.mxu0 0
    %1720 = vmatprep.subr.bf16.mxu0 0
    %1721 = vmatpush1.bf16.msra.mxu0 0
    %1722 = vmatprep.subr.bf16.mxu0 0
    %1723 = vmatpush1.bf16.msra.mxu0 0
    %1724 = vmatprep.subr.bf16.mxu0 0
    %1725 = vmatpush1.bf16.msra.mxu0 0
    %1726 = vmatprep.subr.bf16.mxu0 0
    %1727 = vmatpush1.bf16.msra.mxu0 0
    %1728 = vmatprep.mubr.bf16.mxu0 0
    %1729 = vmatmul.mubr.bf16.gmra.mrb[0].mxu0 %v1542
    %v1730 = vpop.f32.mrb[0].mxu0
    %v1731 = vadd.f32 0.0, %v1730
    %v1732 = vpop.f32.mrb[0].mxu0
    %v1733 = vpop.f32.mrb[0].mxu0
    %v1734 = vpop.f32.mrb[0].mxu0
    %1735 = vdwg.mxu0
    %v1736 = vadd.f32 %v151, %v1731
    %v1737 = vxor.u32 %v1736, 2147483648
    %v1738 = vmul.f32 %v1737, 1.442695
    %v1739 = vpow.pop %v1738
    %v1740 = vadd.f32 %v1739, 1.0
    %v1741 = vrcp.pop %v1740
    %v1742 = vmul.f32 1.0, %v1741
    %v1743 = vtanh.pop %v1736
    %v1744 = vmul.f32 %v1742, %v1530
    %1746 = vrot.lane.b32.xlu0 %v1743, 64
    %v1747 = vpop.permute.xlu0 %1746
    %v1749 = vmul.f32 %v1742, %v1747
    %1751 = vrot.lane.b32.xlu0 %v1749, 32
    %v1752 = vpop.permute.xlu0 %1751
    %v1754 = vadd.f32 %v1744, %v1752
    %v1755 = vtanh.pop %v1754
    %1757 = vrot.lane.b32.xlu0 %v1755, 64
    %v1758 = vpop.permute.xlu0 %1757
    %v1760 = vmul.f32 %v1742, %v1758
    %v1761 = vpack.c.bf16 %v1760, %v1760
    %1763 = vrot.lane.b32.xlu0 %v1761, 32
    %v1764 = vpop.permute.xlu0 %1763
    %v1766 = vsel %vm112, %v1764, 0
    %1768 = vmatprep.subr.bf16.mxu0 0
    %1769 = vmatpush1.bf16.msra.mxu0 %v198
    %1770 = vmatprep.subr.bf16.mxu0 0
    %1771 = vmatpush1.bf16.msra.mxu0 %v199
    %1772 = vmatprep.subr.bf16.mxu0 0
    %1773 = vmatpush1.bf16.msra.mxu0 0
    %1774 = vmatprep.subr.bf16.mxu0 0
    %1775 = vmatpush1.bf16.msra.mxu0 0
    %1776 = vmatprep.subr.bf16.mxu0 0
    %1777 = vmatpush1.bf16.msra.mxu0 0
    %1778 = vmatprep.subr.bf16.mxu0 0
    %1779 = vmatpush1.bf16.msra.mxu0 0
    %1780 = vmatprep.subr.bf16.mxu0 0
    %1781 = vmatpush1.bf16.msra.mxu0 0
    %1782 = vmatprep.subr.bf16.mxu0 0
    %1783 = vmatpush1.bf16.msra.mxu0 0
    %1784 = vmatprep.subr.bf16.mxu0 0
    %1785 = vmatpush1.bf16.msra.mxu0 0
    %1786 = vmatprep.subr.bf16.mxu0 0
    %1787 = vmatpush1.bf16.msra.mxu0 0
    %1788 = vmatprep.subr.bf16.mxu0 0
    %1789 = vmatpush1.bf16.msra.mxu0 0
    %1790 = vmatprep.subr.bf16.mxu0 0
    %1791 = vmatpush1.bf16.msra.mxu0 0
    %1792 = vmatprep.subr.bf16.mxu0 0
    %1793 = vmatpush1.bf16.msra.mxu0 0
    %1794 = vmatprep.subr.bf16.mxu0 0
    %1795 = vmatpush1.bf16.msra.mxu0 0
    %1796 = vmatprep.subr.bf16.mxu0 0
    %1797 = vmatpush1.bf16.msra.mxu0 0
    %1798 = vmatprep.subr.bf16.mxu0 0
    %1799 = vmatpush1.bf16.msra.mxu0 0
    %1800 = vmatprep.mubr.bf16.mxu0 0
    %1801 = vmatmul.mubr.bf16.gmra.mrb[0].mxu0 %v1766
    %v1802 = vpop.f32.mrb[0].mxu0
    %v1803 = vadd.f32 %v185, %v1802
    %v1804 = vpop.f32.mrb[0].mxu0
    %v1805 = vpop.f32.mrb[0].mxu0
    %v1806 = vpop.f32.mrb[0].mxu0
    %1807 = vdwg.mxu0
    %1808 = vmatprep.subr.bf16.mxu0 0
    %1809 = vmatpush1.bf16.msra.mxu0 %v460
    %1810 = vmatprep.subr.bf16.mxu0 0
    %1811 = vmatpush1.bf16.msra.mxu0 %v461
    %1812 = vmatprep.subr.bf16.mxu0 0
    %1813 = vmatpush1.bf16.msra.mxu0 0
    %1814 = vmatprep.subr.bf16.mxu0 0
    %1815 = vmatpush1.bf16.msra.mxu0 0
    %1816 = vmatprep.subr.bf16.mxu0 0
    %1817 = vmatpush1.bf16.msra.mxu0 0
    %1818 = vmatprep.subr.bf16.mxu0 0
    %1819 = vmatpush1.bf16.msra.mxu0 0
    %1820 = vmatprep.subr.bf16.mxu0 0
    %1821 = vmatpush1.bf16.msra.mxu0 0
    %1822 = vmatprep.subr.bf16.mxu0 0
    %1823 = vmatpush1.bf16.msra.mxu0 0
    %1824 = vmatprep.subr.bf16.mxu0 0
    %1825 = vmatpush1.bf16.msra.mxu0 0
    %1826 = vmatprep.subr.bf16.mxu0 0
    %1827 = vmatpush1.bf16.msra.mxu0 0
    %1828 = vmatprep.subr.bf16.mxu0 0
    %1829 = vmatpush1.bf16.msra.mxu0 0
    %1830 = vmatprep.subr.bf16.mxu0 0
    %1831 = vmatpush1.bf16.msra.mxu0 0
    %1832 = vmatprep.subr.bf16.mxu0 0
    %1833 = vmatpush1.bf16.msra.mxu0 0
    %1834 = vmatprep.subr.bf16.mxu0 0
    %1835 = vmatpush1.bf16.msra.mxu0 0
    %1836 = vmatprep.subr.bf16.mxu0 0
    %1837 = vmatpush1.bf16.msra.mxu0 0
    %1838 = vmatprep.subr.bf16.mxu0 0
    %1839 = vmatpush1.bf16.msra.mxu0 0
    %1840 = vmatprep.mubr.bf16.mxu0 0
    %1841 = vmatmul.mubr.bf16.gmra.mrb[0].mxu0 %v1654
    %v1842 = vpop.f32.mrb[0].mxu0
    %v1843 = vadd.f32 0.0, %v1842
    %v1844 = vpop.f32.mrb[0].mxu0
    %v1845 = vpop.f32.mrb[0].mxu0
    %v1846 = vpop.f32.mrb[0].mxu0
    %1847 = vdwg.mxu0
    %v1848 = vadd.f32 %v1803, %v1843
    %v1849 = vxor.u32 %v1848, 2147483648
    %v1850 = vmul.f32 %v1849, 1.442695
    %v1851 = vpow.pop %v1850
    %v1852 = vadd.f32 %v1851, 1.0
    %v1853 = vrcp.pop %v1852
    %v1854 = vmul.f32 1.0, %v1853
    %v1855 = vtanh.pop %v1848
    %v1856 = vmul.f32 %v1854, %v1642
    %1858 = vrot.lane.b32.xlu0 %v1855, 64
    %v1859 = vpop.permute.xlu0 %1858
    %v1861 = vmul.f32 %v1854, %v1859
    %1863 = vrot.lane.b32.xlu0 %v1861, 32
    %v1864 = vpop.permute.xlu0 %1863
    %v1866 = vadd.f32 %v1856, %v1864
    %v1867 = vtanh.pop %v1866
    %1869 = vrot.lane.b32.xlu0 %v1867, 64
    %v1870 = vpop.permute.xlu0 %1869
    %v1872 = vmul.f32 %v1854, %v1870
    %v1873 = vpack.c.bf16 %v1872, %v1872
    %1875 = vrot.lane.b32.xlu0 %v1873, 32
    %v1876 = vpop.permute.xlu0 %1875
    %v1878 = vsel %vm112, %v1876, 0
    %1880 = vmatprep.subr.bf16.mxu0 0
    %1881 = vmatpush1.bf16.msra.mxu0 %v281
    %1882 = vmatprep.subr.bf16.mxu0 0
    %1883 = vmatpush1.bf16.msra.mxu0 %v282
    %1884 = vmatprep.subr.bf16.mxu0 0
    %1885 = vmatpush1.bf16.msra.mxu0 0
    %1886 = vmatprep.subr.bf16.mxu0 0
    %1887 = vmatpush1.bf16.msra.mxu0 0
    %1888 = vmatprep.subr.bf16.mxu0 0
    %1889 = vmatpush1.bf16.msra.mxu0 0
    %1890 = vmatprep.subr.bf16.mxu0 0
    %1891 = vmatpush1.bf16.msra.mxu0 0
    %1892 = vmatprep.subr.bf16.mxu0 0
    %1893 = vmatpush1.bf16.msra.mxu0 0
    %1894 = vmatprep.subr.bf16.mxu0 0
    %1895 = vmatpush1.bf16.msra.mxu0 0
    %1896 = vmatprep.subr.bf16.mxu0 0
    %1897 = vmatpush1.bf16.msra.mxu0 0
    %1898 = vmatprep.subr.bf16.mxu0 0
    %1899 = vmatpush1.bf16.msra.mxu0 0
    %1900 = vmatprep.subr.bf16.mxu0 0
    %1901 = vmatpush1.bf16.msra.mxu0 0
    %1902 = vmatprep.subr.bf16.mxu0 0
    %1903 = vmatpush1.bf16.msra.mxu0 0
    %1904 = vmatprep.subr.bf16.mxu0 0
    %1905 = vmatpush1.bf16.msra.mxu0 0
    %1906 = vmatprep.subr.bf16.mxu0 0
    %1907 = vmatpush1.bf16.msra.mxu0 0
    %1908 = vmatprep.subr.bf16.mxu0 0
    %1909 = vmatpush1.bf16.msra.mxu0 0
    %1910 = vmatprep.subr.bf16.mxu0 0
    %1911 = vmatpush1.bf16.msra.mxu0 0
    %1912 = vmatprep.mubr.bf16.mxu0 0
    %1913 = vmatmul.mubr.bf16.gmra.mrb[0].mxu0 %v1878
    %v1914 = vpop.f32.mrb[0].mxu0
    %v1915 = vadd.f32 0.0, %v1914
    %v1916 = vpop.f32.mrb[0].mxu0
    %v1917 = vpop.f32.mrb[0].mxu0
    %v1918 = vpop.f32.mrb[0].mxu0
    %1919 = vdwg.mxu0
    %1921 = vrot.lane.b32.xlu0 %v571, 16
    %v1922 = vpop.permute.xlu0 %1921
    %1925 = vrot.lane.b32.xlu0 %v795, 32
    %v1926 = vpop.permute.xlu0 %1925
    %1929 = vrot.lane.b32.xlu0 %v1019, 48
    %v1930 = vpop.permute.xlu0 %1929
    %1933 = vrot.lane.b32.xlu0 %v1243, 64
    %v1934 = vpop.permute.xlu0 %1933
    %1937 = vrot.lane.b32.xlu0 %v1467, 80
    %v1938 = vpop.permute.xlu0 %1937
    %1941 = vrot.lane.b32.xlu0 %v1691, 96
    %v1942 = vpop.permute.xlu0 %1941
    %1945 = vrot.lane.b32.xlu0 %v1915, 112
    %v1946 = vpop.permute.xlu0 %1945
    %vm1948 = vcmask 130048
    %v1949 = vsel %vm1948, %v323, %v1922
    %v1950 = vsel %vm112, %v1949, %v1926
    %vm1951 = vcmask 392192
    %v1952 = vsel %vm1951, %v1950, %v1930
    %vm1953 = vcmask 523264
    %v1954 = vsel %vm1953, %v1952, %v1934
    %vm1955 = vcmask 654336
    %v1956 = vsel %vm1955, %v1954, %v1938
    %vm1957 = vcmask 785408
    %v1958 = vsel %vm1957, %v1956, %v1942
    %vm1959 = vcmask 916480
    %v1960 = vsel %vm1959, %v1958, %v1946
    %v1961 = vld [vmem:[#allocation6] sm:$0x1]
    %v1963 = vlaneseq
    %v1964 = vshrl.u32 %v1963, 7
    %v1965 = vsub.s32 0, %v1964
    %v1966 = vrot.slane %v1961, %v1965
    %v1968 = vadd.f32 %v1960, %v1966
    %1969 = vst [vmem:[%s9] sm:$0x3] %v1968
    // Predicated region
    $region50: #{decoder_forward.1} parent=1 // pred_check
      _
    $region51: #{decoder_forward.1} parent=1 // pred_check_branch
      %1971 = sbr.rel (0) target = $region53
    $region52: #{decoder_forward.1} parent=1 // pred_region
      _
    $region53: #{decoder_forward.1} parent=1 // pred_fallthru
      _
    // Predicated region
    $region54: #{decoder_forward.1} parent=1 // pred_check
      _
    $region55: #{decoder_forward.1} parent=1 // pred_check_branch
      %1973 = sbr.rel (0) target = $region57
    $region56: #{decoder_forward.1} parent=1 // pred_region
      _
    $region57: #{decoder_forward.1} parent=1 // pred_fallthru
      _
    %1974 = vsyncpa [#allocation3], 1
    %1975 = vsyncpa [#allocation5], 1

</llo_original>
